<compile_context>
chip_gen: v5e
topology: v5e:2x2
jax: 0.10.0
libtpu: 0.0.40
codegen_flags: <defaults>
</compile_context>

<pallas_src>
import functools
import inspect

import jax
import jax.numpy as jnp
from jax.experimental import pallas as pl
from jax.experimental.pallas import tpu as pltpu

LANE = 128  # vreg lane width (last axis)


def _round_up(n, m):
    return (n + m - 1) // m * m


def _sublane(dtype):
    # Minimum second-to-last tile dim: 8 for 4-byte dtypes, 16 for 2-byte.
    return 8 if jnp.dtype(dtype).itemsize >= 4 else 16


def _pad_dim(d):
    # Lane-dense padding only when it is cheap relative to the dim. Tiny dims
    # stay unpadded: full-dim blocks are legal and avoid multiplying zero work
    # (and, for the output, avoid writing 8x bytes + a slicing pass).
    if d <= LANE or d % LANE == 0:
        return d
    return _round_up(d, LANE)


@functools.lru_cache(maxsize=None)
def _vmem_budget_and_limit():
    try:
        cap = int(pltpu.get_tpu_info().vmem_capacity_bytes)
    except Exception:  # info query unavailable -> assume the tightest chip (v7x)
        cap = 64 * 1024 * 1024
    budget = int(cap * 0.70)   # what the wrapper plans against
    limit = int(cap * 0.75)    # what we tell the compiler (headroom over budget)
    return budget, limit


try:
    _HAS_PIPELINE_MODE = (hasattr(pl, "Buffered") and
                          "pipeline_mode" in inspect.signature(pl.BlockSpec).parameters)
except (TypeError, ValueError):
    _HAS_PIPELINE_MODE = False


# ---------------------------------------------------------------------------
# Kernels
# ---------------------------------------------------------------------------

def _mlp_resident_kernel(x_ref, w1_ref, b1_ref, w2_ref, b2_ref, o_ref):
    # Layer 1 on the MXU with f32 accumulation; bias + ReLU in f32 on the VPU.
    h = jnp.dot(x_ref[...].astype(w1_ref.dtype), w1_ref[...],
                preferred_element_type=jnp.float32)
    h = jnp.maximum(h + b1_ref[...], 0.0)
    # Layer 2: operands in the weights' compute dtype, f32 accumulation.
    y = jnp.dot(h.astype(w2_ref.dtype), w2_ref[...],
                preferred_element_type=jnp.float32)
    o_ref[...] = (y + b2_ref[...]).astype(o_ref.dtype)


def _mlp_htiled_kernel(x_ref, w1_ref, b1_ref, w2_ref, b2_ref, o_ref, acc_ref):
    # Hidden dim is the trailing ("arbitrary") grid axis; the output tile is
    # revisited across it, so accumulate layer-2 partial sums in a VMEM f32
    # scratch and only write the output on the last hidden step.
    j = pl.program_id(1)

    @pl.when(j == 0)
    def _():
        acc_ref[...] = jnp.zeros_like(acc_ref)

    h = jnp.dot(x_ref[...].astype(w1_ref.dtype), w1_ref[...],
                preferred_element_type=jnp.float32)
    h = jnp.maximum(h + b1_ref[...], 0.0)
    acc_ref[...] += jnp.dot(h.astype(w2_ref.dtype), w2_ref[...],
                            preferred_element_type=jnp.float32)

    @pl.when(j == pl.num_programs(1) - 1)
    def _():
        o_ref[...] = (acc_ref[...] + b2_ref[...]).astype(o_ref.dtype)


# ---------------------------------------------------------------------------
# Parameter preparation (hoisted out of the per-call path)
# ---------------------------------------------------------------------------

def prepare_params(w1, b1, w2, b2, *, compute_dtype=None):
    """Pad / cast the two Linear layers ONCE.

    w1: [input_size, hidden_size]   b1: [hidden_size]
    w2: [hidden_size, output_size]  b2: [output_size]
    compute_dtype: dtype of the MXU operands (bf16 recommended, esp. on v5e);
        accumulation, bias add and ReLU are always f32.
    """
    if compute_dtype is None:
        compute_dtype = w1.dtype
    compute_dtype = jnp.dtype(compute_dtype)

    K, H = w1.shape
    H2, N = w2.shape
    assert H2 == H and b1.reshape(-1).shape[0] == H and b2.reshape(-1).shape[0] == N

    Hp, Np = _pad_dim(H), _pad_dim(N)

    def pad_cast(a, shape):
        if a.shape == shape and a.dtype == compute_dtype:
            return a
        out = jnp.zeros(shape, compute_dtype)
        return out.at[:a.shape[0], :a.shape[1]].set(a.astype(compute_dtype))

    def pad_bias(b, width):
        # NOTE: bias padding must stay zero - padded hidden columns then give
        # relu(0 + 0) = 0 and contribute nothing to layer 2.
        out = jnp.zeros((1, width), jnp.float32)
        return out.at[0, :b.reshape(-1).shape[0]].set(b.reshape(-1).astype(jnp.float32))

    return dict(
        w1=pad_cast(w1, (K, Hp)), b1=pad_bias(b1, Hp),
        w2=pad_cast(w2, (Hp, Np)), b2=pad_bias(b2, Np),
        in_features=K, hidden=H, out_features=N, compute_dtype=compute_dtype,
    )


# ---------------------------------------------------------------------------
# Forward pass
# ---------------------------------------------------------------------------

def two_layer_net(x, params, *, tile_m=512, tile_h=None, out_dtype=None):
    """Fused y = relu(x @ w1 + b1) @ w2 + b2 using params from prepare_params()."""
    w1p, b1p, w2p, b2p = params["w1"], params["b1"], params["w2"], params["b2"]
    K, N = params["in_features"], params["out_features"]
    Hp, Np = w1p.shape[1], w2p.shape[1]
    compute_dtype = params["compute_dtype"]
    in_bytes = compute_dtype.itemsize

    if out_dtype is None:
        out_dtype = x.dtype
    out_bytes = jnp.dtype(out_dtype).itemsize
    x_bytes = jnp.dtype(x.dtype).itemsize

    M = x.shape[0]
    assert x.shape == (M, K), f"x shape {x.shape} does not match weights ({K} in)"

    budget, vmem_limit = _vmem_budget_and_limit()
    sub = _sublane(compute_dtype)

    # ---- working-set accounting (per grid step, incl. pipelining buffers) ---
    def vmem_bytes(tm, th, h_tiled):
        wbuf = 2 if (h_tiled or not _HAS_PIPELINE_MODE) else 1
        return (2 * tm * K * x_bytes                                   # x tile (2x buffered)
                + (tm * K * in_bytes if x.dtype != compute_dtype else 0)  # in-kernel x cast
                + 2 * tm * Np * out_bytes                              # out tile (2x buffered)
                + wbuf * (K * th + th * Np) * in_bytes                 # w1 / w2 tiles
                + wbuf * (th + Np) * 4                                 # b1 / b2 (f32)
                + tm * th * 4                                          # h in f32
                + (tm * th * in_bytes if compute_dtype != jnp.float32 else 0)  # h cast
                + tm * Np * 4                                          # layer-2 f32 result
                + (tm * Np * 4 if h_tiled else 0))                     # accumulator scratch

    def fit_tile_m(tm, th, h_tiled):
        while tm > sub and vmem_bytes(tm, th, h_tiled) > budget:
            tm = max(sub, _round_up(tm // 2, sub))
        return tm

    # ---- choose batch / hidden tiles ----------------------------------------
    tile_m = max(sub, _round_up(min(int(tile_m), _round_up(M, sub)), sub))
    forced_th = tile_h
    h_tiled = False

    if forced_th is not None and int(forced_th) != Hp:
        forced_th = int(forced_th)
        if Hp % forced_th != 0 or forced_th % LANE != 0:
            raise ValueError("tile_h must be a multiple of 128 that divides the "
                             "padded hidden dimension")
        h_tiled, tile_h = True, forced_th
        tile_m = fit_tile_m(tile_m, tile_h, True)
        if vmem_bytes(tile_m, tile_h, True) > budget:
            raise ValueError("requested tile_h does not fit in VMEM")
    else:
        # Prefer the weight-resident path (weights DMA'd once, stay in VMEM).
        tm = fit_tile_m(tile_m, Hp, False)
        if vmem_bytes(tm, Hp, False) <= budget:
            tile_m, tile_h = tm, Hp
        else:
            # Weights too large to keep resident -> hidden reduction axis.
            # TODO(synk): prefer 256-wide hidden tiles on v6e/v7x (2x256x256 MXU)
            # when Hp allows it.
            if Hp % LANE != 0:
                raise ValueError("hidden dim must be lane-padded to be tiled")
            found, tm = None, tile_m
            while found is None:
                for c in range(Hp // LANE, 0, -1):
                    th = c * LANE
                    if Hp % th == 0 and vmem_bytes(tm, th, True) <= budget:
                        found = (tm, th)
                        break
                if found is None:
                    if tm <= sub:
                        # TODO(synk): add a K (input-feature) reduction axis for
                        # extremely wide inputs instead of giving up here.
                        raise ValueError("TwoLayerNet tiles do not fit in VMEM "
                                         "even with hidden tiling")
                    tm = max(sub, _round_up(tm // 2, sub))
            h_tiled = True
            tile_m, tile_h = found

    # Best effort: even number of batch tiles so both v7x TensorCores get equal work.
    m_tiles = pl.cdiv(M, tile_m)
    if m_tiles > 1 and m_tiles % 2 == 1:
        tm2 = max(sub, _round_up(tile_m // 2, sub))
        if tm2 < tile_m and pl.cdiv(M, tm2) % 2 == 0:
            tile_m = tm2
            m_tiles = pl.cdiv(M, tile_m)

    # Pad the batch only when it does not divide the tile (demo: no copy at all).
    Mp = m_tiles * tile_m
    xin = x if Mp == M else jnp.zeros((Mp, K), x.dtype).at[:M].set(x)

    # ---- grid / specs --------------------------------------------------------
    if not h_tiled:
        grid = (m_tiles,)
        dim_sem = ("parallel",)
        kernel = _mlp_resident_kernel
        scratch_shapes = []
        out_spec = pl.BlockSpec((tile_m, Np), lambda i: (i, 0))
        w_reads = 1
    else:
        grid = (m_tiles, Hp // tile_h)
        dim_sem = ("parallel", "arbitrary")
        kernel = _mlp_htiled_kernel
        scratch_shapes = [pltpu.VMEM((tile_m, Np), jnp.float32)]
        out_spec = pl.BlockSpec((tile_m, Np), lambda i, j: (i, 0))
        w_reads = m_tiles  # weight tiles are re-streamed per batch tile

    def make_in_specs(single_buffer_weights):
        if not h_tiled:
            def const(shape):
                if single_buffer_weights:
                    return pl.BlockSpec(shape, lambda i: (0, 0),
                                        pipeline_mode=pl.Buffered(1))
                return pl.BlockSpec(shape, lambda i: (0, 0))
            return [
                pl.BlockSpec((tile_m, K), lambda i: (i, 0)),   # x streamed over batch
                const((K, Hp)), const((1, Hp)),                # grid-invariant weights
                const((Hp, Np)), const((1, Np)),
            ]
        return [
            pl.BlockSpec((tile_m, K), lambda i, j: (i, 0)),
            pl.BlockSpec((K, tile_h), lambda i, j: (0, j)),
            pl.BlockSpec((1, tile_h), lambda i, j: (0, j)),
            pl.BlockSpec((tile_h, Np), lambda i, j: (j, 0)),
            pl.BlockSpec((1, Np), lambda i, j: (0, 0)),
        ]

    # Cost estimate for the problem the kernel actually executes.
    cost = pl.CostEstimate(
        flops=2 * Mp * (K * Hp + Hp * Np),
        transcendentals=0,
        bytes_accessed=int(Mp * K * x_bytes
                           + w_reads * (w1p.size + w2p.size) * in_bytes
                           + w_reads * (b1p.size + b2p.size) * 4
                           + Mp * Np * out_bytes),
    )

    def run(single_buffer_weights):
        return pl.pallas_call(
            kernel,
            out_shape=jax.ShapeDtypeStruct((Mp, Np), out_dtype),
            grid=grid,
            in_specs=make_in_specs(single_buffer_weights),
            out_specs=out_spec,
            scratch_shapes=scratch_shapes,
            compiler_params=pltpu.CompilerParams(
                dimension_semantics=dim_sem,
                vmem_limit_bytes=vmem_limit),
            cost_estimate=cost,
        )(xin, w1p, b1p, w2p, b2p)

    if (not h_tiled) and _HAS_PIPELINE_MODE:
        try:
            yp = run(True)
        except Exception:
            # Conservative fallback if this JAX build rejects Buffered(1) specs.
            yp = run(False)
    else:
        yp = run(False)

    # Only slice what was actually padded (small N stays unpadded -> no-op).
    if Mp != M:
        yp = yp[:M]
    if Np != N:
        yp = yp[:, :N]
    return yp


def two_layer_net_from_weights(x, w1, b1, w2, b2, *, compute_dtype=None, **kwargs):
    """One-shot convenience wrapper (prepare_params + forward)."""
    params = prepare_params(w1, b1, w2, b2, compute_dtype=compute_dtype)
    return two_layer_net(x, params, **kwargs)


# ---------------------------------------------------------------------------
# Demo / self-test
# ---------------------------------------------------------------------------

if __name__ == "__main__":
    key = jax.random.PRNGKey(0)
    (kx, kw1, kb1, kw2, kb2, kx2, kw3, kb3, kw4, kb4) = jax.random.split(key, 10)

    # ---- Test 1: module-like small shapes (weight-resident path) -----------
    M, input_size, hidden_size, output_size = 1024, 64, 32, 16
    x = jax.random.normal(kx, (M, input_size), dtype=jnp.float32)

    # nn.Linear-style U(-1/sqrt(fan_in), 1/sqrt(fan_in)) init.
    bound1 = 1.0 / jnp.sqrt(jnp.float32(input_size))
    bound2 = 1.0 / jnp.sqrt(jnp.float32(hidden_size))
    w1 = jax.random.uniform(kw1, (input_size, hidden_size), jnp.float32,
                            minval=-bound1, maxval=bound1)
    b1 = jax.random.uniform(kb1, (hidden_size,), jnp.float32,
                            minval=-bound1, maxval=bound1)
    w2 = jax.random.uniform(kw2, (hidden_size, output_size), jnp.float32,
                            minval=-bound2, maxval=bound2)
    b2 = jax.random.uniform(kb2, (output_size,), jnp.float32,
                            minval=-bound2, maxval=bound2)

    y_ref = jnp.maximum(x @ w1 + b1, 0.0) @ w2 + b2

    # f32 operands (matches the PyTorch module's numerics); params padded once.
    params_f32 = prepare_params(w1, b1, w2, b2)
    y = two_layer_net(x, params_f32)                       # 2 batch tiles of 512
    jax.block_until_ready(y)
    assert y.shape == (M, output_size)
    assert jnp.allclose(y, y_ref, atol=1e-4, rtol=1e-4)

    # bf16 MXU operands, f32 accumulation / bias / ReLU (fast path on v5e/v6e/v7x).
    params_bf16 = prepare_params(w1, b1, w2, b2, compute_dtype=jnp.bfloat16)
    y_bf16 = two_layer_net(x, params_bf16)
    jax.block_until_ready(y_bf16)
    assert jnp.allclose(y_bf16, y_ref, atol=5e-2, rtol=5e-2)

    # ---- Test 2: hidden-reduction path (forced tile_h, accumulator + pl.when) --
    M2, K2, H2, N2 = 256, 128, 256, 128
    x2 = jax.random.normal(kx2, (M2, K2), dtype=jnp.float32)
    w3 = jax.random.normal(kw3, (K2, H2), jnp.float32) * 0.05
    b3 = jax.random.normal(kb3, (H2,), jnp.float32) * 0.05
    w4 = jax.random.normal(kw4, (H2, N2), jnp.float32) * 0.05
    b4 = jax.random.normal(kb4, (N2,), jnp.float32) * 0.05
    y2_ref = jnp.maximum(x2 @ w3 + b3, 0.0) @ w4 + b4

    y2 = two_layer_net_from_weights(x2, w3, b3, w4, b4, tile_m=128, tile_h=128)
    jax.block_until_ready(y2)
    assert y2.shape == (M2, N2)
    assert jnp.allclose(y2, y2_ref, atol=1e-3, rtol=1e-3)

    print("KERNEL_OK")
</pallas_src>

<mosaic_0001>
module attributes {stable_mosaic.version = 11 : i64} {
  func.func @_mlp_resident_kernel(%arg0: i32, %arg1: memref<512x64xf32, #tpu.memory_space<vmem>>, %arg2: memref<64x32xf32, #tpu.memory_space<vmem>>, %arg3: memref<1x32xf32, #tpu.memory_space<vmem>>, %arg4: memref<32x16xf32, #tpu.memory_space<vmem>>, %arg5: memref<1x16xf32, #tpu.memory_space<vmem>>, %arg6: memref<512x16xf32, #tpu.memory_space<vmem>>) attributes {dimension_semantics = [#tpu.dimension_semantics<parallel>], iteration_bounds = array<i64: 2>, scalar_prefetch = 0 : i64, scratch_operands = 0 : i64, tpu.core_type = #tpu.core_type<tc>, window_params = [{transform_indices = @transform_0, window_bounds = array<i64: 512, 64>}, {pipeline_mode = #tpu.pipeline_mode<synchronous>, transform_indices = @transform_1, window_bounds = array<i64: 64, 32>}, {pipeline_mode = #tpu.pipeline_mode<synchronous>, transform_indices = @transform_2, window_bounds = array<i64: 1, 32>}, {pipeline_mode = #tpu.pipeline_mode<synchronous>, transform_indices = @transform_3, window_bounds = array<i64: 32, 16>}, {pipeline_mode = #tpu.pipeline_mode<synchronous>, transform_indices = @transform_4, window_bounds = array<i64: 1, 16>}, {transform_indices = @transform_5, window_bounds = array<i64: 512, 16>}]} {
    %c0 = arith.constant 0 : index
    %c0_0 = arith.constant 0 : index
    %0 = vector.load %arg1[%c0, %c0_0] : memref<512x64xf32, #tpu.memory_space<vmem>>, vector<512x64xf32>
    %c0_1 = arith.constant 0 : index
    %c0_2 = arith.constant 0 : index
    %1 = vector.load %arg2[%c0_1, %c0_2] : memref<64x32xf32, #tpu.memory_space<vmem>>, vector<64x32xf32>
    %cst = arith.constant dense<0.000000e+00> : vector<512x32xf32>
    %2 = tpu.matmul %0, %1, %cst {dimension_numbers = #tpu.dot_dimension_numbers<[1], [0], [0], [1], [0, 0, 1, 1], [], []>} : vector<512x64xf32>, vector<64x32xf32>, vector<512x32xf32> -> vector<512x32xf32>
    %c0_3 = arith.constant 0 : index
    %c0_4 = arith.constant 0 : index
    %3 = vector.load %arg3[%c0_3, %c0_4] : memref<1x32xf32, #tpu.memory_space<vmem>>, vector<1x32xf32>
    %4 = vector.broadcast %3 : vector<1x32xf32> to vector<512x32xf32>
    %5 = arith.addf %2, %4 : vector<512x32xf32>
    %cst_5 = arith.constant 0.000000e+00 : f32
    %6 = vector.broadcast %cst_5 : f32 to vector<512x32xf32>
    %7 = arith.maximumf %5, %6 : vector<512x32xf32>
    %c0_6 = arith.constant 0 : index
    %c0_7 = arith.constant 0 : index
    %8 = vector.load %arg4[%c0_6, %c0_7] : memref<32x16xf32, #tpu.memory_space<vmem>>, vector<32x16xf32>
    %cst_8 = arith.constant dense<0.000000e+00> : vector<512x16xf32>
    %9 = tpu.matmul %7, %8, %cst_8 {dimension_numbers = #tpu.dot_dimension_numbers<[1], [0], [0], [1], [0, 0, 1, 1], [], []>} : vector<512x32xf32>, vector<32x16xf32>, vector<512x16xf32> -> vector<512x16xf32>
    %c0_9 = arith.constant 0 : index
    %c0_10 = arith.constant 0 : index
    %10 = vector.load %arg5[%c0_9, %c0_10] : memref<1x16xf32, #tpu.memory_space<vmem>>, vector<1x16xf32>
    %11 = vector.broadcast %10 : vector<1x16xf32> to vector<512x16xf32>
    %12 = arith.addf %9, %11 : vector<512x16xf32>
    %c0_11 = arith.constant 0 : index
    %c0_12 = arith.constant 0 : index
    %13 = vector.load %arg6[%c0_11, %c0_12] : memref<512x16xf32, #tpu.memory_space<vmem>>, vector<512x16xf32>
    tpu.vector_store %arg6[%c0_11, %c0_12], %12 {strides = array<i32>} : memref<512x16xf32, #tpu.memory_space<vmem>>, vector<512x16xf32>,
    return
  }
  func.func @transform_0(%arg0: i32) -> (i32, i32) {
    %c0_i32 = arith.constant 0 : i32
    %c0_i32_0 = arith.constant 0 : i32
    return %arg0, %c0_i32 : i32, i32
  }
  func.func @transform_1(%arg0: i32) -> (i32, i32) {
    %c0_i32 = arith.constant 0 : i32
    %c0_i32_0 = arith.constant 0 : i32
    %c0_i32_1 = arith.constant 0 : i32
    return %c0_i32, %c0_i32_0 : i32, i32
  }
  func.func @transform_2(%arg0: i32) -> (i32, i32) {
    %c0_i32 = arith.constant 0 : i32
    %c0_i32_0 = arith.constant 0 : i32
    %c0_i32_1 = arith.constant 0 : i32
    return %c0_i32, %c0_i32_0 : i32, i32
  }
  func.func @transform_3(%arg0: i32) -> (i32, i32) {
    %c0_i32 = arith.constant 0 : i32
    %c0_i32_0 = arith.constant 0 : i32
    %c0_i32_1 = arith.constant 0 : i32
    return %c0_i32, %c0_i32_0 : i32, i32
  }
  func.func @transform_4(%arg0: i32) -> (i32, i32) {
    %c0_i32 = arith.constant 0 : i32
    %c0_i32_0 = arith.constant 0 : i32
    %c0_i32_1 = arith.constant 0 : i32
    return %c0_i32, %c0_i32_0 : i32, i32
  }
  func.func @transform_5(%arg0: i32) -> (i32, i32) {
    %c0_i32 = arith.constant 0 : i32
    %c0_i32_0 = arith.constant 0 : i32
    return %arg0, %c0_i32 : i32, i32
  }
}

module attributes {stable_mosaic.version = 11 : i64} {
  func.func @_mlp_resident_kernel(%arg0: i32, %arg1: memref<512x64xf32, #tpu.memory_space<vmem>>, %arg2: memref<64x32xf32, #tpu.memory_space<vmem>>, %arg3: memref<1x32xf32, #tpu.memory_space<vmem>>, %arg4: memref<32x16xf32, #tpu.memory_space<vmem>>, %arg5: memref<1x16xf32, #tpu.memory_space<vmem>>, %arg6: memref<512x16xf32, #tpu.memory_space<vmem>>) attributes {dimension_semantics = [#tpu.dimension_semantics<parallel>], iteration_bounds = array<i64: 2>, scalar_prefetch = 0 : i64, scratch_operands = 0 : i64, tpu.core_type = #tpu.core_type<tc>, window_params = [{transform_indices = @transform_0, window_bounds = array<i64: 512, 64>}, {pipeline_mode = #tpu.pipeline_mode<synchronous>, transform_indices = @transform_1, window_bounds = array<i64: 64, 32>}, {pipeline_mode = #tpu.pipeline_mode<synchronous>, transform_indices = @transform_2, window_bounds = array<i64: 1, 32>}, {pipeline_mode = #tpu.pipeline_mode<synchronous>, transform_indices = @transform_3, window_bounds = array<i64: 32, 16>}, {pipeline_mode = #tpu.pipeline_mode<synchronous>, transform_indices = @transform_4, window_bounds = array<i64: 1, 16>}, {transform_indices = @transform_5, window_bounds = array<i64: 512, 16>}]} {
    %c0 = arith.constant 0 : index
    %c0_0 = arith.constant 0 : index
    %0 = vector.load %arg1[%c0, %c0_0] : memref<512x64xf32, #tpu.memory_space<vmem>>, vector<512x64xf32>
    %c0_1 = arith.constant 0 : index
    %c0_2 = arith.constant 0 : index
    %1 = vector.load %arg2[%c0_1, %c0_2] : memref<64x32xf32, #tpu.memory_space<vmem>>, vector<64x32xf32>
    %cst = arith.constant dense<0.000000e+00> : vector<512x32xf32>
    %2 = tpu.matmul %0, %1, %cst {dimension_numbers = #tpu.dot_dimension_numbers<[1], [0], [0], [1], [0, 0, 1, 1], [], []>} : vector<512x64xf32>, vector<64x32xf32>, vector<512x32xf32> -> vector<512x32xf32>
    %c0_3 = arith.constant 0 : index
    %c0_4 = arith.constant 0 : index
    %3 = vector.load %arg3[%c0_3, %c0_4] : memref<1x32xf32, #tpu.memory_space<vmem>>, vector<1x32xf32>
    %4 = vector.broadcast %3 : vector<1x32xf32> to vector<512x32xf32>
    %5 = arith.addf %2, %4 : vector<512x32xf32>
    %cst_5 = arith.constant 0.000000e+00 : f32
    %6 = vector.broadcast %cst_5 : f32 to vector<512x32xf32>
    %7 = arith.maximumf %5, %6 : vector<512x32xf32>
    %c0_6 = arith.constant 0 : index
    %c0_7 = arith.constant 0 : index
    %8 = vector.load %arg4[%c0_6, %c0_7] : memref<32x16xf32, #tpu.memory_space<vmem>>, vector<32x16xf32>
    %cst_8 = arith.constant dense<0.000000e+00> : vector<512x16xf32>
    %9 = tpu.matmul %7, %8, %cst_8 {dimension_numbers = #tpu.dot_dimension_numbers<[1], [0], [0], [1], [0, 0, 1, 1], [], []>} : vector<512x32xf32>, vector<32x16xf32>, vector<512x16xf32> -> vector<512x16xf32>
    %c0_9 = arith.constant 0 : index
    %c0_10 = arith.constant 0 : index
    %10 = vector.load %arg5[%c0_9, %c0_10] : memref<1x16xf32, #tpu.memory_space<vmem>>, vector<1x16xf32>
    %11 = vector.broadcast %10 : vector<1x16xf32> to vector<512x16xf32>
    %12 = arith.addf %9, %11 : vector<512x16xf32>
    %c0_11 = arith.constant 0 : index
    %c0_12 = arith.constant 0 : index
    %13 = vector.load %arg6[%c0_11, %c0_12] : memref<512x16xf32, #tpu.memory_space<vmem>>, vector<512x16xf32>
    tpu.vector_store %arg6[%c0_11, %c0_12], %12 {strides = array<i32>} : memref<512x16xf32, #tpu.memory_space<vmem>>, vector<512x16xf32>,
    return
  }
  func.func @transform_0(%arg0: i32) -> (i32, i32) {
    %c0_i32 = arith.constant 0 : i32
    %c0_i32_0 = arith.constant 0 : i32
    return %arg0, %c0_i32 : i32, i32
  }
  func.func @transform_1(%arg0: i32) -> (i32, i32) {
    %c0_i32 = arith.constant 0 : i32
    %c0_i32_0 = arith.constant 0 : i32
    %c0_i32_1 = arith.constant 0 : i32
    return %c0_i32, %c0_i32_0 : i32, i32
  }
  func.func @transform_2(%arg0: i32) -> (i32, i32) {
    %c0_i32 = arith.constant 0 : i32
    %c0_i32_0 = arith.constant 0 : i32
    %c0_i32_1 = arith.constant 0 : i32
    return %c0_i32, %c0_i32_0 : i32, i32
  }
  func.func @transform_3(%arg0: i32) -> (i32, i32) {
    %c0_i32 = arith.constant 0 : i32
    %c0_i32_0 = arith.constant 0 : i32
    %c0_i32_1 = arith.constant 0 : i32
    return %c0_i32, %c0_i32_0 : i32, i32
  }
  func.func @transform_4(%arg0: i32) -> (i32, i32) {
    %c0_i32 = arith.constant 0 : i32
    %c0_i32_0 = arith.constant 0 : i32
    %c0_i32_1 = arith.constant 0 : i32
    return %c0_i32, %c0_i32_0 : i32, i32
  }
  func.func @transform_5(%arg0: i32) -> (i32, i32) {
    %c0_i32 = arith.constant 0 : i32
    %c0_i32_0 = arith.constant 0 : i32
    return %arg0, %c0_i32 : i32, i32
  }
}

</mosaic_0001>

<llo_original>
// kernel: tpu_custom_call.1
$region0: #{tpu_custom_call.1}
  #allocation0 [shape = 'u32[]', space=smem, size = 0x4, offset = 0x4, fixed_abs, tag = 'smem constant byte address 0x4 - core index']
  #allocation1 [shape = 'u32[72,128]{1,0:T(1,128)}', space=vmem, size = 0x9000, scoped, tag = 'internal scratch']
  %s0 = inlined_call_operand.vmem [shape: f32[1024,64], index: 0, kind: input, shape index: {}]
  %s1 = inlined_call_operand.vmem [shape: f32[64,32], index: 1, kind: input, shape index: {}]
  %s2 = inlined_call_operand.vmem [shape: f32[1,32], index: 2, kind: input, shape index: {}]
  %s3 = inlined_call_operand.vmem [shape: f32[32,16], index: 3, kind: input, shape index: {}]
  %s4 = inlined_call_operand.vmem [shape: f32[1,16], index: 4, kind: input, shape index: {}]
  %s5 = inlined_call_operand.vmem [shape: f32[1024,16], index: 5, kind: output, shape index: {}]
  %s6 = sld [smem:[#allocation0]]
  $region53: #{tpu_custom_call.1} parent=0
    _
  %s8 = ssub.s32 1, %s6
  %s9 = scalar_select 0, %s8, %s6
  loop: start=0, step=1, limit=4
  $region2: #{tpu_custom_call.1} parent=0 // loop_pre_header
    _
  $region3: #{tpu_custom_call.1} parent=0 // loop_header
    %s11 = sphi 0, %s15
    %p12 = scmp.ge.s32.totalorder %s11, 4
    %s21 = sphi 0, %s23
    %s24 = sphi 0, %s21
    %s25 = sphi 0, %s24
    %s41 = sphi 0, %s25
    %s45 = sphi 0, %s45
    %s47 = sphi 0, %s45
    %s48 = sphi 0, %s47
    %s62 = sphi 0, %s48
    %s66 = sphi 0, %s66
    %s68 = sphi 0, %s66
    %s69 = sphi 0, %s68
    %s83 = sphi 0, %s69
    %s87 = sphi 0, %s87
    %s89 = sphi 0, %s87
    %s90 = sphi 0, %s89
    %s104 = sphi 0, %s90
    %s108 = sphi 0, %s108
    %s110 = sphi 0, %s108
    %s111 = sphi 0, %s110
    %s125 = sphi 0, %s111
    %s131 = sphi 0, %s133
    %s134 = sphi 0, %s131
    %s135 = sphi 0, %s134
    %s151 = sphi 0, %s135
  $region4: #{tpu_custom_call.1} parent=0 // loop_header_branch
    %14 = sbr.rel (%p12) target = $region8
  $region5: #{tpu_custom_call.1} parent=0 // loop_body
    %s16 = ssub.s32 %s11, 1
    %s17 = ssub.s32 %s11, 2
    %s18 = sadd.s32 %s11, 1
    %s19 = ssub.s32 %s11, %s18
    %p20 = scmp.eq.s32.totalorder %s19, 0
    %s22 = sadd.s32 %s21, 1
    %s23 = scalar_select %p20, %s21, %s22
    %p26 = pneg %p20
    %p27 = scmp.eq.s32.totalorder %s11, 1
    %p28 = por %p26, %p27
    %p29 = scmp.ne.s32.totalorder %s21, %s24
    %p30 = scmp.eq.s32.totalorder %s11, 0
    %p31 = por %p29, %p30
    %p32 = scmp.ne.s32.totalorder %s21, %s24
    %p33 = scmp.eq.s32.totalorder %s16, 1
    %p34 = por %p32, %p33
    %p35 = scmp.ne.s32.totalorder %s24, %s25
    %p36 = scmp.eq.s32.totalorder %s16, 0
    %p37 = por %p35, %p36
    %p38 = scmp.ne.s32.totalorder %s24, %s25
    %p39 = scmp.eq.s32.totalorder %s17, 1
    %p40 = por %p38, %p39
    %p42 = scmp.ne.s32.totalorder %s25, %s41
    %p43 = scmp.eq.s32.totalorder %s17, 0
    %p44 = por %p42, %p43
    %s46 = sadd.s32 %s45, 1
    %p49 = scmp.eq.s32.totalorder %s11, 1
    %p50 = scmp.ne.s32.totalorder %s45, %s47
    %p51 = scmp.eq.s32.totalorder %s11, 0
    %p52 = por %p50, %p51
    %p53 = scmp.ne.s32.totalorder %s45, %s47
    %p54 = scmp.eq.s32.totalorder %s16, 1
    %p55 = por %p53, %p54
    %p56 = scmp.ne.s32.totalorder %s47, %s48
    %p57 = scmp.eq.s32.totalorder %s16, 0
    %p58 = por %p56, %p57
    %p59 = scmp.ne.s32.totalorder %s47, %s48
    %p60 = scmp.eq.s32.totalorder %s17, 1
    %p61 = por %p59, %p60
    %p63 = scmp.ne.s32.totalorder %s48, %s62
    %p64 = scmp.eq.s32.totalorder %s17, 0
    %p65 = por %p63, %p64
    %s67 = sadd.s32 %s66, 1
    %p70 = scmp.eq.s32.totalorder %s11, 1
    %p71 = scmp.ne.s32.totalorder %s66, %s68
    %p72 = scmp.eq.s32.totalorder %s11, 0
    %p73 = por %p71, %p72
    %p74 = scmp.ne.s32.totalorder %s66, %s68
    %p75 = scmp.eq.s32.totalorder %s16, 1
    %p76 = por %p74, %p75
    %p77 = scmp.ne.s32.totalorder %s68, %s69
    %p78 = scmp.eq.s32.totalorder %s16, 0
    %p79 = por %p77, %p78
    %p80 = scmp.ne.s32.totalorder %s68, %s69
    %p81 = scmp.eq.s32.totalorder %s17, 1
    %p82 = por %p80, %p81
    %p84 = scmp.ne.s32.totalorder %s69, %s83
    %p85 = scmp.eq.s32.totalorder %s17, 0
    %p86 = por %p84, %p85
    %s88 = sadd.s32 %s87, 1
    %p91 = scmp.eq.s32.totalorder %s11, 1
    %p92 = scmp.ne.s32.totalorder %s87, %s89
    %p93 = scmp.eq.s32.totalorder %s11, 0
    %p94 = por %p92, %p93
    %p95 = scmp.ne.s32.totalorder %s87, %s89
    %p96 = scmp.eq.s32.totalorder %s16, 1
    %p97 = por %p95, %p96
    %p98 = scmp.ne.s32.totalorder %s89, %s90
    %p99 = scmp.eq.s32.totalorder %s16, 0
    %p100 = por %p98, %p99
    %p101 = scmp.ne.s32.totalorder %s89, %s90
    %p102 = scmp.eq.s32.totalorder %s17, 1
    %p103 = por %p101, %p102
    %p105 = scmp.ne.s32.totalorder %s90, %s104
    %p106 = scmp.eq.s32.totalorder %s17, 0
    %p107 = por %p105, %p106
    %s109 = sadd.s32 %s108, 1
    %p112 = scmp.eq.s32.totalorder %s11, 1
    %p113 = scmp.ne.s32.totalorder %s108, %s110
    %p114 = scmp.eq.s32.totalorder %s11, 0
    %p115 = por %p113, %p114
    %p116 = scmp.ne.s32.totalorder %s108, %s110
    %p117 = scmp.eq.s32.totalorder %s16, 1
    %p118 = por %p116, %p117
    %p119 = scmp.ne.s32.totalorder %s110, %s111
    %p120 = scmp.eq.s32.totalorder %s16, 0
    %p121 = por %p119, %p120
    %p122 = scmp.ne.s32.totalorder %s110, %s111
    %p123 = scmp.eq.s32.totalorder %s17, 1
    %p124 = por %p122, %p123
    %p126 = scmp.ne.s32.totalorder %s111, %s125
    %p127 = scmp.eq.s32.totalorder %s17, 0
    %p128 = por %p126, %p127
    %s129 = ssub.s32 %s11, %s18
    %p130 = scmp.eq.s32.totalorder %s129, 0
    %s132 = sadd.s32 %s131, 1
    %s133 = scalar_select %p130, %s131, %s132
    %p136 = pneg %p130
    %p137 = scmp.eq.s32.totalorder %s11, 1
    %p138 = por %p136, %p137
    %p139 = scmp.ne.s32.totalorder %s131, %s134
    %p140 = scmp.eq.s32.totalorder %s11, 0
    %p141 = por %p139, %p140
    %p142 = scmp.ne.s32.totalorder %s131, %s134
    %p143 = scmp.eq.s32.totalorder %s16, 1
    %p144 = por %p142, %p143
    %p145 = scmp.ne.s32.totalorder %s134, %s135
    %p146 = scmp.eq.s32.totalorder %s16, 0
    %p147 = por %p145, %p146
    %p148 = scmp.ne.s32.totalorder %s134, %s135
    %p149 = scmp.eq.s32.totalorder %s17, 1
    %p150 = por %p148, %p149
    %p152 = scmp.ne.s32.totalorder %s135, %s151
    %p153 = scmp.eq.s32.totalorder %s17, 0
    %p154 = por %p152, %p153
    %p155 = scmp.le.s32.totalorder 1, %s11
    %p156 = scmp.lt.s32.totalorder %s11, 3
    %p157 = pnand %p155, %p156
    %p158 = pneg %p157
    // Predicated region
    $region9: #{tpu_custom_call.1} parent=5 // pred_check
      _
    $region10: #{tpu_custom_call.1} parent=5 // pred_check_branch
      %160 = sbr.rel (%p157) target = $region12
    $region11: #{tpu_custom_call.1} parent=5 // pred_region
      %s161 = ssub.s32 %s11, 1
      // Predicated region
      $region13: #{tpu_custom_call.1} parent=11 // pred_check
        %p162 = pneg %p58
      $region14: #{tpu_custom_call.1} parent=11 // pred_check_branch
        %164 = sbr.rel (%p162) target = $region16
      $region15: #{tpu_custom_call.1} parent=11 // pred_region
        _
      $region16: #{tpu_custom_call.1} parent=11 // pred_fallthru
        _
      // Predicated region
      $region17: #{tpu_custom_call.1} parent=11 // pred_check
        %p165 = pneg %p79
      $region18: #{tpu_custom_call.1} parent=11 // pred_check_branch
        %167 = sbr.rel (%p165) target = $region20
      $region19: #{tpu_custom_call.1} parent=11 // pred_region
        _
      $region20: #{tpu_custom_call.1} parent=11 // pred_fallthru
        _
      // Predicated region
      $region21: #{tpu_custom_call.1} parent=11 // pred_check
        %p168 = pneg %p100
      $region22: #{tpu_custom_call.1} parent=11 // pred_check_branch
        %170 = sbr.rel (%p168) target = $region24
      $region23: #{tpu_custom_call.1} parent=11 // pred_region
        _
      $region24: #{tpu_custom_call.1} parent=11 // pred_fallthru
        _
      // Predicated region
      $region25: #{tpu_custom_call.1} parent=11 // pred_check
        %p171 = pneg %p121
      $region26: #{tpu_custom_call.1} parent=11 // pred_check_branch
        %173 = sbr.rel (%p171) target = $region28
      $region27: #{tpu_custom_call.1} parent=11 // pred_region
        _
      $region28: #{tpu_custom_call.1} parent=11 // pred_fallthru
        _
    $region12: #{tpu_custom_call.1} parent=5 // pred_fallthru
      _
    %p174 = scmp.lt.s32.totalorder %s11, 2
    // Predicated region
    $region29: #{tpu_custom_call.1} parent=5 // pred_check
      %p175 = pneg %p174
    $region30: #{tpu_custom_call.1} parent=5 // pred_check_branch
      %177 = sbr.rel (%p175) target = $region32
    $region31: #{tpu_custom_call.1} parent=5 // pred_region
      // Predicated region
      $region33: #{tpu_custom_call.1} parent=31 // pred_check
        %p178 = pneg %p31
      $region34: #{tpu_custom_call.1} parent=31 // pred_check_branch
        %180 = sbr.rel (%p178) target = $region36
      $region35: #{tpu_custom_call.1} parent=31 // pred_region
        %s181 = smul.u32 64, %s11
        %p182 = scmp.lt.s32.totalorder %s181, 127
        %s183 = scalar_select %p182, %s181, 127
        %s184 = smul.addr %s183, 8
        %s185 = scalar_lea.vmem %s0, %s184
        %s186 = smul.u32 64, %s11
      $region36: #{tpu_custom_call.1} parent=31 // pred_fallthru
        _
    $region32: #{tpu_custom_call.1} parent=5 // pred_fallthru
      _
    %p187 = scmp.le.s32.totalorder 1, %s11
    %p188 = scmp.lt.s32.totalorder %s11, 3
    %p189 = pnand %p187, %p188
    %p190 = pneg %p189
    // Predicated region
    $region37: #{tpu_custom_call.1} parent=5 // pred_check
      _
    $region38: #{tpu_custom_call.1} parent=5 // pred_check_branch
      %192 = sbr.rel (%p189) target = $region40
    $region39: #{tpu_custom_call.1} parent=5 // pred_region
      %s193 = ssub.s32 %s11, 1
      %s194 = smul.u32 64, %s16
      %p195 = scmp.lt.s32.totalorder %s194, 127
      %s196 = scalar_select %p195, %s194, 127
      %s197 = smul.addr %s196, 8
      %s198 = scalar_lea.vmem %s0, %s197
      %p199 = pneg %p37
      %p200 = pneg %p34
      %p201 = pneg %p58
      %p202 = pneg %p55
      %p203 = pneg %p79
      %p204 = pneg %p76
      %p205 = pneg %p100
      %p206 = pneg %p97
      %p207 = pneg %p121
      %p208 = pneg %p118
      %p209 = pneg %p147
      %p210 = pneg %p144
      %s211 = smul.u32 64, %s16
      %p212 = scmp.lt.s32.totalorder %s211, 127
      %s213 = scalar_select %p212, %s211, 127
      %s214 = smul.addr %s213, 8
      %s215 = scalar_lea.vmem %s5, %s214
      %s216 = smul.u32 64, %s16
      %p217 = scmp.lt.s32.totalorder %s216, 127
      %s218 = scalar_select %p217, %s216, 127
      %s219 = smul.addr %s218, 8
      %s220 = scalar_lea.vmem %s0, %s219
      %s221 = smul.u32 64, %s16
      %s222 = smul.u32 64, %s16
      %p223 = scmp.lt.s32.totalorder %s222, 127
      %s224 = scalar_select %p223, %s222, 127
      %s225 = smul.addr %s224, 8
      %s226 = scalar_lea.vmem %s5, %s225
      %s227 = smul.u32 64, %s16
      %v228 = vld [vmem:[%s220] sm:$0xff]
      %v229 = vld [vmem:[%s220 + $0x8] sm:$0xff]
      %v230 = vld [vmem:[%s220 + $0x10] sm:$0xff]
      %v231 = vld [vmem:[%s220 + $0x18] sm:$0xff]
      %v232 = vld [vmem:[%s220 + $0x20] sm:$0xff]
      %v233 = vld [vmem:[%s220 + $0x28] sm:$0xff]
      %v234 = vld [vmem:[%s220 + $0x30] sm:$0xff]
      %v235 = vld [vmem:[%s220 + $0x38] sm:$0xff]
      %v236 = vld [vmem:[%s220 + $0x40] sm:$0xff]
      %v237 = vld [vmem:[%s220 + $0x48] sm:$0xff]
      %v238 = vld [vmem:[%s220 + $0x50] sm:$0xff]
      %v239 = vld [vmem:[%s220 + $0x58] sm:$0xff]
      %v240 = vld [vmem:[%s220 + $0x60] sm:$0xff]
      %v241 = vld [vmem:[%s220 + $0x68] sm:$0xff]
      %v242 = vld [vmem:[%s220 + $0x70] sm:$0xff]
      %v243 = vld [vmem:[%s220 + $0x78] sm:$0xff]
      %v244 = vld [vmem:[%s220 + $0x80] sm:$0xff]
      %v245 = vld [vmem:[%s220 + $0x88] sm:$0xff]
      %v246 = vld [vmem:[%s220 + $0x90] sm:$0xff]
      %v247 = vld [vmem:[%s220 + $0x98] sm:$0xff]
      %v248 = vld [vmem:[%s220 + $0xa0] sm:$0xff]
      %v249 = vld [vmem:[%s220 + $0xa8] sm:$0xff]
      %v250 = vld [vmem:[%s220 + $0xb0] sm:$0xff]
      %v251 = vld [vmem:[%s220 + $0xb8] sm:$0xff]
      %v252 = vld [vmem:[%s220 + $0xc0] sm:$0xff]
      %v253 = vld [vmem:[%s220 + $0xc8] sm:$0xff]
      %v254 = vld [vmem:[%s220 + $0xd0] sm:$0xff]
      %v255 = vld [vmem:[%s220 + $0xd8] sm:$0xff]
      %v256 = vld [vmem:[%s220 + $0xe0] sm:$0xff]
      %v257 = vld [vmem:[%s220 + $0xe8] sm:$0xff]
      %v258 = vld [vmem:[%s220 + $0xf0] sm:$0xff]
      %v259 = vld [vmem:[%s220 + $0xf8] sm:$0xff]
      %v260 = vld [vmem:[%s220 + $0x100] sm:$0xff]
      %v261 = vld [vmem:[%s220 + $0x108] sm:$0xff]
      %v262 = vld [vmem:[%s220 + $0x110] sm:$0xff]
      %v263 = vld [vmem:[%s220 + $0x118] sm:$0xff]
      %v264 = vld [vmem:[%s220 + $0x120] sm:$0xff]
      %v265 = vld [vmem:[%s220 + $0x128] sm:$0xff]
      %v266 = vld [vmem:[%s220 + $0x130] sm:$0xff]
      %v267 = vld [vmem:[%s220 + $0x138] sm:$0xff]
      %v268 = vld [vmem:[%s220 + $0x140] sm:$0xff]
      %v269 = vld [vmem:[%s220 + $0x148] sm:$0xff]
      %v270 = vld [vmem:[%s220 + $0x150] sm:$0xff]
      %v271 = vld [vmem:[%s220 + $0x158] sm:$0xff]
      %v272 = vld [vmem:[%s220 + $0x160] sm:$0xff]
      %v273 = vld [vmem:[%s220 + $0x168] sm:$0xff]
      %v274 = vld [vmem:[%s220 + $0x170] sm:$0xff]
      %v275 = vld [vmem:[%s220 + $0x178] sm:$0xff]
      %v276 = vld [vmem:[%s220 + $0x180] sm:$0xff]
      %v277 = vld [vmem:[%s220 + $0x188] sm:$0xff]
      %v278 = vld [vmem:[%s220 + $0x190] sm:$0xff]
      %v279 = vld [vmem:[%s220 + $0x198] sm:$0xff]
      %v280 = vld [vmem:[%s220 + $0x1a0] sm:$0xff]
      %v281 = vld [vmem:[%s220 + $0x1a8] sm:$0xff]
      %v282 = vld [vmem:[%s220 + $0x1b0] sm:$0xff]
      %v283 = vld [vmem:[%s220 + $0x1b8] sm:$0xff]
      %v284 = vld [vmem:[%s220 + $0x1c0] sm:$0xff]
      %v285 = vld [vmem:[%s220 + $0x1c8] sm:$0xff]
      %v286 = vld [vmem:[%s220 + $0x1d0] sm:$0xff]
      %v287 = vld [vmem:[%s220 + $0x1d8] sm:$0xff]
      %v288 = vld [vmem:[%s220 + $0x1e0] sm:$0xff]
      %v289 = vld [vmem:[%s220 + $0x1e8] sm:$0xff]
      %v290 = vld [vmem:[%s220 + $0x1f0] sm:$0xff]
      %v291 = vld [vmem:[%s220 + $0x1f8] sm:$0xff]
      %v292 = vld [vmem:[%s1] sm:$0xff]
      %v293 = vld [vmem:[%s1 + $0x8] sm:$0xff]
      %v294 = vld [vmem:[%s1 + $0x10] sm:$0xff]
      %v295 = vld [vmem:[%s1 + $0x18] sm:$0xff]
      %v296 = vld [vmem:[%s1 + $0x20] sm:$0xff]
      %v297 = vld [vmem:[%s1 + $0x28] sm:$0xff]
      %v298 = vld [vmem:[%s1 + $0x30] sm:$0xff]
      %v299 = vld [vmem:[%s1 + $0x38] sm:$0xff]
      %v300 = vld [vmem:[%s2] sm:$0x1]
      %v302 = vperm.slane %v300, 0
      %vm304 = vcmask 523264
      %v306 = vsel %vm304, %v228, 0
      %v309 = vsel %vm304, %v229, 0
      %v312 = vsel %vm304, %v230, 0
      %v315 = vsel %vm304, %v231, 0
      %v318 = vsel %vm304, %v232, 0
      %v321 = vsel %vm304, %v233, 0
      %v324 = vsel %vm304, %v234, 0
      %v327 = vsel %vm304, %v235, 0
      %v330 = vsel %vm304, %v236, 0
      %v333 = vsel %vm304, %v237, 0
      %v336 = vsel %vm304, %v238, 0
      %v339 = vsel %vm304, %v239, 0
      %v342 = vsel %vm304, %v240, 0
      %v345 = vsel %vm304, %v241, 0
      %v348 = vsel %vm304, %v242, 0
      %v351 = vsel %vm304, %v243, 0
      %v354 = vsel %vm304, %v244, 0
      %v357 = vsel %vm304, %v245, 0
      %v360 = vsel %vm304, %v246, 0
      %v363 = vsel %vm304, %v247, 0
      %v366 = vsel %vm304, %v248, 0
      %v369 = vsel %vm304, %v249, 0
      %v372 = vsel %vm304, %v250, 0
      %v375 = vsel %vm304, %v251, 0
      %v378 = vsel %vm304, %v252, 0
      %v381 = vsel %vm304, %v253, 0
      %v384 = vsel %vm304, %v254, 0
      %v387 = vsel %vm304, %v255, 0
      %v390 = vsel %vm304, %v256, 0
      %v393 = vsel %vm304, %v257, 0
      %v396 = vsel %vm304, %v258, 0
      %v399 = vsel %vm304, %v259, 0
      %v402 = vsel %vm304, %v260, 0
      %v405 = vsel %vm304, %v261, 0
      %v408 = vsel %vm304, %v262, 0
      %v411 = vsel %vm304, %v263, 0
      %v414 = vsel %vm304, %v264, 0
      %v417 = vsel %vm304, %v265, 0
      %v420 = vsel %vm304, %v266, 0
      %v423 = vsel %vm304, %v267, 0
      %v426 = vsel %vm304, %v268, 0
      %v429 = vsel %vm304, %v269, 0
      %v432 = vsel %vm304, %v270, 0
      %v435 = vsel %vm304, %v271, 0
      %v438 = vsel %vm304, %v272, 0
      %v441 = vsel %vm304, %v273, 0
      %v444 = vsel %vm304, %v274, 0
      %v447 = vsel %vm304, %v275, 0
      %v450 = vsel %vm304, %v276, 0
      %v453 = vsel %vm304, %v277, 0
      %v456 = vsel %vm304, %v278, 0
      %v459 = vsel %vm304, %v279, 0
      %v462 = vsel %vm304, %v280, 0
      %v465 = vsel %vm304, %v281, 0
      %v468 = vsel %vm304, %v282, 0
      %v471 = vsel %vm304, %v283, 0
      %v474 = vsel %vm304, %v284, 0
      %v477 = vsel %vm304, %v285, 0
      %v480 = vsel %vm304, %v286, 0
      %v483 = vsel %vm304, %v287, 0
      %v486 = vsel %vm304, %v288, 0
      %v489 = vsel %vm304, %v289, 0
      %v492 = vsel %vm304, %v290, 0
      %v495 = vsel %vm304, %v291, 0
      %497 = vmatpush.msra.mxu0 0.0
      %498 = vmatpush.msra.mxu0 0.0
      %499 = vmatpush.msra.mxu0 0.0
      %500 = vmatpush.msra.mxu0 0.0
      %501 = vmatpush.msra.mxu0 0.0
      %502 = vmatpush.msra.mxu0 0.0
      %503 = vmatpush.msra.mxu0 0.0
      %504 = vmatpush.msra.mxu0 0.0
      %505 = vmatpush.msra.mxu0 %v299
      %506 = vmatpush.msra.mxu0 %v298
      %507 = vmatpush.msra.mxu0 %v297
      %508 = vmatpush.msra.mxu0 %v296
      %509 = vmatpush.msra.mxu0 %v295
      %510 = vmatpush.msra.mxu0 %v294
      %511 = vmatpush.msra.mxu0 %v293
      %512 = vmatpush.msra.mxu0 %v292
      %513 = vmatmul.f32.gmra.mxu0 %v306
      %v514 = vpop.f32.mrf.mxu0
      %v515 = vadd.f32 %v302, %v514
      %516 = vmatmul.f32.gmra.mxu0 %v309
      %v517 = vpop.f32.mrf.mxu0
      %v518 = vadd.f32 %v302, %v517
      %519 = vmatmul.f32.gmra.mxu0 %v312
      %v520 = vpop.f32.mrf.mxu0
      %v521 = vadd.f32 %v302, %v520
      %522 = vmatmul.f32.gmra.mxu0 %v315
      %v523 = vpop.f32.mrf.mxu0
      %v524 = vadd.f32 %v302, %v523
      %525 = vmatmul.f32.gmra.mxu0 %v318
      %v526 = vpop.f32.mrf.mxu0
      %v527 = vadd.f32 %v302, %v526
      %528 = vmatmul.f32.gmra.mxu0 %v321
      %v529 = vpop.f32.mrf.mxu0
      %v530 = vadd.f32 %v302, %v529
      %531 = vmatmul.f32.gmra.mxu0 %v324
      %v532 = vpop.f32.mrf.mxu0
      %v533 = vadd.f32 %v302, %v532
      %534 = vmatmul.f32.gmra.mxu0 %v327
      %v535 = vpop.f32.mrf.mxu0
      %v536 = vadd.f32 %v302, %v535
      %537 = vmatmul.f32.gmra.mxu0 %v330
      %v538 = vpop.f32.mrf.mxu0
      %v539 = vadd.f32 %v302, %v538
      %540 = vmatmul.f32.gmra.mxu0 %v333
      %v541 = vpop.f32.mrf.mxu0
      %v542 = vadd.f32 %v302, %v541
      %543 = vmatmul.f32.gmra.mxu0 %v336
      %v544 = vpop.f32.mrf.mxu0
      %v545 = vadd.f32 %v302, %v544
      %546 = vmatmul.f32.gmra.mxu0 %v339
      %v547 = vpop.f32.mrf.mxu0
      %v548 = vadd.f32 %v302, %v547
      %549 = vmatmul.f32.gmra.mxu0 %v342
      %v550 = vpop.f32.mrf.mxu0
      %v551 = vadd.f32 %v302, %v550
      %552 = vmatmul.f32.gmra.mxu0 %v345
      %v553 = vpop.f32.mrf.mxu0
      %v554 = vadd.f32 %v302, %v553
      %555 = vmatmul.f32.gmra.mxu0 %v348
      %v556 = vpop.f32.mrf.mxu0
      %v557 = vadd.f32 %v302, %v556
      %558 = vmatmul.f32.gmra.mxu0 %v351
      %v559 = vpop.f32.mrf.mxu0
      %v560 = vadd.f32 %v302, %v559
      %561 = vmatmul.f32.gmra.mxu0 %v354
      %v562 = vpop.f32.mrf.mxu0
      %v563 = vadd.f32 %v302, %v562
      %564 = vmatmul.f32.gmra.mxu0 %v357
      %v565 = vpop.f32.mrf.mxu0
      %v566 = vadd.f32 %v302, %v565
      %567 = vmatmul.f32.gmra.mxu0 %v360
      %v568 = vpop.f32.mrf.mxu0
      %v569 = vadd.f32 %v302, %v568
      %570 = vmatmul.f32.gmra.mxu0 %v363
      %v571 = vpop.f32.mrf.mxu0
      %v572 = vadd.f32 %v302, %v571
      %573 = vmatmul.f32.gmra.mxu0 %v366
      %v574 = vpop.f32.mrf.mxu0
      %v575 = vadd.f32 %v302, %v574
      %576 = vmatmul.f32.gmra.mxu0 %v369
      %v577 = vpop.f32.mrf.mxu0
      %v578 = vadd.f32 %v302, %v577
      %579 = vmatmul.f32.gmra.mxu0 %v372
      %v580 = vpop.f32.mrf.mxu0
      %v581 = vadd.f32 %v302, %v580
      %582 = vmatmul.f32.gmra.mxu0 %v375
      %v583 = vpop.f32.mrf.mxu0
      %v584 = vadd.f32 %v302, %v583
      %585 = vmatmul.f32.gmra.mxu0 %v378
      %v586 = vpop.f32.mrf.mxu0
      %v587 = vadd.f32 %v302, %v586
      %588 = vmatmul.f32.gmra.mxu0 %v381
      %v589 = vpop.f32.mrf.mxu0
      %v590 = vadd.f32 %v302, %v589
      %591 = vmatmul.f32.gmra.mxu0 %v384
      %v592 = vpop.f32.mrf.mxu0
      %v593 = vadd.f32 %v302, %v592
      %594 = vmatmul.f32.gmra.mxu0 %v387
      %v595 = vpop.f32.mrf.mxu0
      %v596 = vadd.f32 %v302, %v595
      %597 = vmatmul.f32.gmra.mxu0 %v390
      %v598 = vpop.f32.mrf.mxu0
      %v599 = vadd.f32 %v302, %v598
      %600 = vmatmul.f32.gmra.mxu0 %v393
      %v601 = vpop.f32.mrf.mxu0
      %v602 = vadd.f32 %v302, %v601
      %603 = vmatmul.f32.gmra.mxu0 %v396
      %v604 = vpop.f32.mrf.mxu0
      %v605 = vadd.f32 %v302, %v604
      %606 = vmatmul.f32.gmra.mxu0 %v399
      %v607 = vpop.f32.mrf.mxu0
      %v608 = vadd.f32 %v302, %v607
      %609 = vmatmul.f32.gmra.mxu0 %v402
      %v610 = vpop.f32.mrf.mxu0
      %v611 = vadd.f32 %v302, %v610
      %612 = vmatmul.f32.gmra.mxu0 %v405
      %v613 = vpop.f32.mrf.mxu0
      %v614 = vadd.f32 %v302, %v613
      %615 = vmatmul.f32.gmra.mxu0 %v408
      %v616 = vpop.f32.mrf.mxu0
      %v617 = vadd.f32 %v302, %v616
      %618 = vmatmul.f32.gmra.mxu0 %v411
      %v619 = vpop.f32.mrf.mxu0
      %v620 = vadd.f32 %v302, %v619
      %621 = vmatmul.f32.gmra.mxu0 %v414
      %v622 = vpop.f32.mrf.mxu0
      %v623 = vadd.f32 %v302, %v622
      %624 = vmatmul.f32.gmra.mxu0 %v417
      %v625 = vpop.f32.mrf.mxu0
      %v626 = vadd.f32 %v302, %v625
      %627 = vmatmul.f32.gmra.mxu0 %v420
      %v628 = vpop.f32.mrf.mxu0
      %v629 = vadd.f32 %v302, %v628
      %630 = vmatmul.f32.gmra.mxu0 %v423
      %v631 = vpop.f32.mrf.mxu0
      %v632 = vadd.f32 %v302, %v631
      %633 = vmatmul.f32.gmra.mxu0 %v426
      %v634 = vpop.f32.mrf.mxu0
      %v635 = vadd.f32 %v302, %v634
      %636 = vmatmul.f32.gmra.mxu0 %v429
      %v637 = vpop.f32.mrf.mxu0
      %v638 = vadd.f32 %v302, %v637
      %639 = vmatmul.f32.gmra.mxu0 %v432
      %v640 = vpop.f32.mrf.mxu0
      %v641 = vadd.f32 %v302, %v640
      %642 = vmatmul.f32.gmra.mxu0 %v435
      %v643 = vpop.f32.mrf.mxu0
      %v644 = vadd.f32 %v302, %v643
      %645 = vmatmul.f32.gmra.mxu0 %v438
      %v646 = vpop.f32.mrf.mxu0
      %v647 = vadd.f32 %v302, %v646
      %648 = vmatmul.f32.gmra.mxu0 %v441
      %v649 = vpop.f32.mrf.mxu0
      %v650 = vadd.f32 %v302, %v649
      %651 = vmatmul.f32.gmra.mxu0 %v444
      %v652 = vpop.f32.mrf.mxu0
      %v653 = vadd.f32 %v302, %v652
      %654 = vmatmul.f32.gmra.mxu0 %v447
      %v655 = vpop.f32.mrf.mxu0
      %v656 = vadd.f32 %v302, %v655
      %657 = vmatmul.f32.gmra.mxu0 %v450
      %v658 = vpop.f32.mrf.mxu0
      %v659 = vadd.f32 %v302, %v658
      %660 = vmatmul.f32.gmra.mxu0 %v453
      %v661 = vpop.f32.mrf.mxu0
      %v662 = vadd.f32 %v302, %v661
      %663 = vmatmul.f32.gmra.mxu0 %v456
      %v664 = vpop.f32.mrf.mxu0
      %v665 = vadd.f32 %v302, %v664
      %666 = vmatmul.f32.gmra.mxu0 %v459
      %v667 = vpop.f32.mrf.mxu0
      %v668 = vadd.f32 %v302, %v667
      %669 = vmatmul.f32.gmra.mxu0 %v462
      %v670 = vpop.f32.mrf.mxu0
      %v671 = vadd.f32 %v302, %v670
      %672 = vmatmul.f32.gmra.mxu0 %v465
      %v673 = vpop.f32.mrf.mxu0
      %v674 = vadd.f32 %v302, %v673
      %675 = vmatmul.f32.gmra.mxu0 %v468
      %v676 = vpop.f32.mrf.mxu0
      %v677 = vadd.f32 %v302, %v676
      %678 = vmatmul.f32.gmra.mxu0 %v471
      %v679 = vpop.f32.mrf.mxu0
      %v680 = vadd.f32 %v302, %v679
      %681 = vmatmul.f32.gmra.mxu0 %v474
      %v682 = vpop.f32.mrf.mxu0
      %v683 = vadd.f32 %v302, %v682
      %684 = vmatmul.f32.gmra.mxu0 %v477
      %v685 = vpop.f32.mrf.mxu0
      %v686 = vadd.f32 %v302, %v685
      %687 = vmatmul.f32.gmra.mxu0 %v480
      %v688 = vpop.f32.mrf.mxu0
      %v689 = vadd.f32 %v302, %v688
      %690 = vmatmul.f32.gmra.mxu0 %v483
      %v691 = vpop.f32.mrf.mxu0
      %v692 = vadd.f32 %v302, %v691
      %693 = vmatmul.f32.gmra.mxu0 %v486
      %v694 = vpop.f32.mrf.mxu0
      %v695 = vadd.f32 %v302, %v694
      %696 = vmatmul.f32.gmra.mxu0 %v489
      %v697 = vpop.f32.mrf.mxu0
      %v698 = vadd.f32 %v302, %v697
      %699 = vmatmul.f32.gmra.mxu0 %v492
      %v700 = vpop.f32.mrf.mxu0
      %v701 = vadd.f32 %v302, %v700
      %702 = vmatmul.f32.gmra.mxu0 %v495
      %v703 = vpop.f32.mrf.mxu0
      %v704 = vadd.f32 %v302, %v703
      %705 = vdwg.mxu0
      %v706 = vmax.f32 %v515, 0.0
      %v707 = vmax.f32 %v518, 0.0
      %v708 = vmax.f32 %v521, 0.0
      %v709 = vmax.f32 %v524, 0.0
      %v710 = vmax.f32 %v527, 0.0
      %v711 = vmax.f32 %v530, 0.0
      %v712 = vmax.f32 %v533, 0.0
      %v713 = vmax.f32 %v536, 0.0
      %v714 = vmax.f32 %v539, 0.0
      %v715 = vmax.f32 %v542, 0.0
      %v716 = vmax.f32 %v545, 0.0
      %v717 = vmax.f32 %v548, 0.0
      %v718 = vmax.f32 %v551, 0.0
      %v719 = vmax.f32 %v554, 0.0
      %v720 = vmax.f32 %v557, 0.0
      %v721 = vmax.f32 %v560, 0.0
      %v722 = vmax.f32 %v563, 0.0
      %v723 = vmax.f32 %v566, 0.0
      %v724 = vmax.f32 %v569, 0.0
      %v725 = vmax.f32 %v572, 0.0
      %v726 = vmax.f32 %v575, 0.0
      %v727 = vmax.f32 %v578, 0.0
      %v728 = vmax.f32 %v581, 0.0
      %v729 = vmax.f32 %v584, 0.0
      %v730 = vmax.f32 %v587, 0.0
      %v731 = vmax.f32 %v590, 0.0
      %v732 = vmax.f32 %v593, 0.0
      %v733 = vmax.f32 %v596, 0.0
      %v734 = vmax.f32 %v599, 0.0
      %v735 = vmax.f32 %v602, 0.0
      %v736 = vmax.f32 %v605, 0.0
      %v737 = vmax.f32 %v608, 0.0
      %v738 = vmax.f32 %v611, 0.0
      %v739 = vmax.f32 %v614, 0.0
      %v740 = vmax.f32 %v617, 0.0
      %v741 = vmax.f32 %v620, 0.0
      %v742 = vmax.f32 %v623, 0.0
      %v743 = vmax.f32 %v626, 0.0
      %v744 = vmax.f32 %v629, 0.0
      %v745 = vmax.f32 %v632, 0.0
      %v746 = vmax.f32 %v635, 0.0
      %v747 = vmax.f32 %v638, 0.0
      %v748 = vmax.f32 %v641, 0.0
      %v749 = vmax.f32 %v644, 0.0
      %v750 = vmax.f32 %v647, 0.0
      %v751 = vmax.f32 %v650, 0.0
      %v752 = vmax.f32 %v653, 0.0
      %v753 = vmax.f32 %v656, 0.0
      %v754 = vmax.f32 %v659, 0.0
      %v755 = vmax.f32 %v662, 0.0
      %v756 = vmax.f32 %v665, 0.0
      %v757 = vmax.f32 %v668, 0.0
      %v758 = vmax.f32 %v671, 0.0
      %v759 = vmax.f32 %v674, 0.0
      %v760 = vmax.f32 %v677, 0.0
      %v761 = vmax.f32 %v680, 0.0
      %v762 = vmax.f32 %v683, 0.0
      %v763 = vmax.f32 %v686, 0.0
      %v764 = vmax.f32 %v689, 0.0
      %v765 = vmax.f32 %v692, 0.0
      %v766 = vmax.f32 %v695, 0.0
      %v767 = vmax.f32 %v698, 0.0
      %v768 = vmax.f32 %v701, 0.0
      %v769 = vmax.f32 %v704, 0.0
      %v770 = vld [vmem:[%s3] sm:$0xff]
      %v771 = vld [vmem:[%s3 + $0x8] sm:$0xff]
      %v772 = vld [vmem:[%s3 + $0x10] sm:$0xff]
      %v773 = vld [vmem:[%s3 + $0x18] sm:$0xff]
      %v774 = vld [vmem:[%s4] sm:$0x1]
      %v776 = vperm.slane %v774, 0
      %vm778 = vcmask 261120
      %v780 = vsel %vm778, %v706, 0
      %v783 = vsel %vm778, %v707, 0
      %v786 = vsel %vm778, %v708, 0
      %v789 = vsel %vm778, %v709, 0
      %v792 = vsel %vm778, %v710, 0
      %v795 = vsel %vm778, %v711, 0
      %v798 = vsel %vm778, %v712, 0
      %v801 = vsel %vm778, %v713, 0
      %v804 = vsel %vm778, %v714, 0
      %v807 = vsel %vm778, %v715, 0
      %v810 = vsel %vm778, %v716, 0
      %v813 = vsel %vm778, %v717, 0
      %v816 = vsel %vm778, %v718, 0
      %v819 = vsel %vm778, %v719, 0
      %v822 = vsel %vm778, %v720, 0
      %v825 = vsel %vm778, %v721, 0
      %v828 = vsel %vm778, %v722, 0
      %v831 = vsel %vm778, %v723, 0
      %v834 = vsel %vm778, %v724, 0
      %v837 = vsel %vm778, %v725, 0
      %v840 = vsel %vm778, %v726, 0
      %v843 = vsel %vm778, %v727, 0
      %v846 = vsel %vm778, %v728, 0
      %v849 = vsel %vm778, %v729, 0
      %v852 = vsel %vm778, %v730, 0
      %v855 = vsel %vm778, %v731, 0
      %v858 = vsel %vm778, %v732, 0
      %v861 = vsel %vm778, %v733, 0
      %v864 = vsel %vm778, %v734, 0
      %v867 = vsel %vm778, %v735, 0
      %v870 = vsel %vm778, %v736, 0
      %v873 = vsel %vm778, %v737, 0
      %v876 = vsel %vm778, %v738, 0
      %v879 = vsel %vm778, %v739, 0
      %v882 = vsel %vm778, %v740, 0
      %v885 = vsel %vm778, %v741, 0
      %v888 = vsel %vm778, %v742, 0
      %v891 = vsel %vm778, %v743, 0
      %v894 = vsel %vm778, %v744, 0
      %v897 = vsel %vm778, %v745, 0
      %v900 = vsel %vm778, %v746, 0
      %v903 = vsel %vm778, %v747, 0
      %v906 = vsel %vm778, %v748, 0
      %v909 = vsel %vm778, %v749, 0
      %v912 = vsel %vm778, %v750, 0
      %v915 = vsel %vm778, %v751, 0
      %v918 = vsel %vm778, %v752, 0
      %v921 = vsel %vm778, %v753, 0
      %v924 = vsel %vm778, %v754, 0
      %v927 = vsel %vm778, %v755, 0
      %v930 = vsel %vm778, %v756, 0
      %v933 = vsel %vm778, %v757, 0
      %v936 = vsel %vm778, %v758, 0
      %v939 = vsel %vm778, %v759, 0
      %v942 = vsel %vm778, %v760, 0
      %v945 = vsel %vm778, %v761, 0
      %v948 = vsel %vm778, %v762, 0
      %v951 = vsel %vm778, %v763, 0
      %v954 = vsel %vm778, %v764, 0
      %v957 = vsel %vm778, %v765, 0
      %v960 = vsel %vm778, %v766, 0
      %v963 = vsel %vm778, %v767, 0
      %v966 = vsel %vm778, %v768, 0
      %v969 = vsel %vm778, %v769, 0
      %971 = vmatpush.msra.mxu0 0.0
      %972 = vmatpush.msra.mxu0 0.0
      %973 = vmatpush.msra.mxu0 0.0
      %974 = vmatpush.msra.mxu0 0.0
      %975 = vmatpush.msra.mxu0 0.0
      %976 = vmatpush.msra.mxu0 0.0
      %977 = vmatpush.msra.mxu0 0.0
      %978 = vmatpush.msra.mxu0 0.0
      %979 = vmatpush.msra.mxu0 0.0
      %980 = vmatpush.msra.mxu0 0.0
      %981 = vmatpush.msra.mxu0 0.0
      %982 = vmatpush.msra.mxu0 0.0
      %983 = vmatpush.msra.mxu0 %v773
      %984 = vmatpush.msra.mxu0 %v772
      %985 = vmatpush.msra.mxu0 %v771
      %986 = vmatpush.msra.mxu0 %v770
      %987 = vmatmul.f32.gmra.mxu0 %v780
      %v988 = vpop.f32.mrf.mxu0
      %v989 = vadd.f32 %v776, %v988
      %990 = vmatmul.f32.gmra.mxu0 %v783
      %v991 = vpop.f32.mrf.mxu0
      %v992 = vadd.f32 %v776, %v991
      %993 = vmatmul.f32.gmra.mxu0 %v786
      %v994 = vpop.f32.mrf.mxu0
      %v995 = vadd.f32 %v776, %v994
      %996 = vmatmul.f32.gmra.mxu0 %v789
      %v997 = vpop.f32.mrf.mxu0
      %v998 = vadd.f32 %v776, %v997
      %999 = vmatmul.f32.gmra.mxu0 %v792
      %v1000 = vpop.f32.mrf.mxu0
      %v1001 = vadd.f32 %v776, %v1000
      %1002 = vmatmul.f32.gmra.mxu0 %v795
      %v1003 = vpop.f32.mrf.mxu0
      %v1004 = vadd.f32 %v776, %v1003
      %1005 = vmatmul.f32.gmra.mxu0 %v798
      %v1006 = vpop.f32.mrf.mxu0
      %v1007 = vadd.f32 %v776, %v1006
      %1008 = vmatmul.f32.gmra.mxu0 %v801
      %v1009 = vpop.f32.mrf.mxu0
      %v1010 = vadd.f32 %v776, %v1009
      %1011 = vmatmul.f32.gmra.mxu0 %v804
      %v1012 = vpop.f32.mrf.mxu0
      %v1013 = vadd.f32 %v776, %v1012
      %1014 = vmatmul.f32.gmra.mxu0 %v807
      %v1015 = vpop.f32.mrf.mxu0
      %v1016 = vadd.f32 %v776, %v1015
      %1017 = vmatmul.f32.gmra.mxu0 %v810
      %v1018 = vpop.f32.mrf.mxu0
      %v1019 = vadd.f32 %v776, %v1018
      %1020 = vmatmul.f32.gmra.mxu0 %v813
      %v1021 = vpop.f32.mrf.mxu0
      %v1022 = vadd.f32 %v776, %v1021
      %1023 = vmatmul.f32.gmra.mxu0 %v816
      %v1024 = vpop.f32.mrf.mxu0
      %v1025 = vadd.f32 %v776, %v1024
      %1026 = vmatmul.f32.gmra.mxu0 %v819
      %v1027 = vpop.f32.mrf.mxu0
      %v1028 = vadd.f32 %v776, %v1027
      %1029 = vmatmul.f32.gmra.mxu0 %v822
      %v1030 = vpop.f32.mrf.mxu0
      %v1031 = vadd.f32 %v776, %v1030
      %1032 = vmatmul.f32.gmra.mxu0 %v825
      %v1033 = vpop.f32.mrf.mxu0
      %v1034 = vadd.f32 %v776, %v1033
      %1035 = vmatmul.f32.gmra.mxu0 %v828
      %v1036 = vpop.f32.mrf.mxu0
      %v1037 = vadd.f32 %v776, %v1036
      %1038 = vmatmul.f32.gmra.mxu0 %v831
      %v1039 = vpop.f32.mrf.mxu0
      %v1040 = vadd.f32 %v776, %v1039
      %1041 = vmatmul.f32.gmra.mxu0 %v834
      %v1042 = vpop.f32.mrf.mxu0
      %v1043 = vadd.f32 %v776, %v1042
      %1044 = vmatmul.f32.gmra.mxu0 %v837
      %v1045 = vpop.f32.mrf.mxu0
      %v1046 = vadd.f32 %v776, %v1045
      %1047 = vmatmul.f32.gmra.mxu0 %v840
      %v1048 = vpop.f32.mrf.mxu0
      %v1049 = vadd.f32 %v776, %v1048
      %1050 = vmatmul.f32.gmra.mxu0 %v843
      %v1051 = vpop.f32.mrf.mxu0
      %v1052 = vadd.f32 %v776, %v1051
      %1053 = vmatmul.f32.gmra.mxu0 %v846
      %v1054 = vpop.f32.mrf.mxu0
      %v1055 = vadd.f32 %v776, %v1054
      %1056 = vmatmul.f32.gmra.mxu0 %v849
      %v1057 = vpop.f32.mrf.mxu0
      %v1058 = vadd.f32 %v776, %v1057
      %1059 = vmatmul.f32.gmra.mxu0 %v852
      %v1060 = vpop.f32.mrf.mxu0
      %v1061 = vadd.f32 %v776, %v1060
      %1062 = vmatmul.f32.gmra.mxu0 %v855
      %v1063 = vpop.f32.mrf.mxu0
      %v1064 = vadd.f32 %v776, %v1063
      %1065 = vmatmul.f32.gmra.mxu0 %v858
      %v1066 = vpop.f32.mrf.mxu0
      %v1067 = vadd.f32 %v776, %v1066
      %1068 = vmatmul.f32.gmra.mxu0 %v861
      %v1069 = vpop.f32.mrf.mxu0
      %v1070 = vadd.f32 %v776, %v1069
      %1071 = vmatmul.f32.gmra.mxu0 %v864
      %v1072 = vpop.f32.mrf.mxu0
      %v1073 = vadd.f32 %v776, %v1072
      %1074 = vmatmul.f32.gmra.mxu0 %v867
      %v1075 = vpop.f32.mrf.mxu0
      %v1076 = vadd.f32 %v776, %v1075
      %1077 = vmatmul.f32.gmra.mxu0 %v870
      %v1078 = vpop.f32.mrf.mxu0
      %v1079 = vadd.f32 %v776, %v1078
      %1080 = vmatmul.f32.gmra.mxu0 %v873
      %v1081 = vpop.f32.mrf.mxu0
      %v1082 = vadd.f32 %v776, %v1081
      %1083 = vmatmul.f32.gmra.mxu0 %v876
      %v1084 = vpop.f32.mrf.mxu0
      %v1085 = vadd.f32 %v776, %v1084
      %1086 = vmatmul.f32.gmra.mxu0 %v879
      %v1087 = vpop.f32.mrf.mxu0
      %v1088 = vadd.f32 %v776, %v1087
      %1089 = vmatmul.f32.gmra.mxu0 %v882
      %v1090 = vpop.f32.mrf.mxu0
      %v1091 = vadd.f32 %v776, %v1090
      %1092 = vmatmul.f32.gmra.mxu0 %v885
      %v1093 = vpop.f32.mrf.mxu0
      %v1094 = vadd.f32 %v776, %v1093
      %1095 = vmatmul.f32.gmra.mxu0 %v888
      %v1096 = vpop.f32.mrf.mxu0
      %v1097 = vadd.f32 %v776, %v1096
      %1098 = vmatmul.f32.gmra.mxu0 %v891
      %v1099 = vpop.f32.mrf.mxu0
      %v1100 = vadd.f32 %v776, %v1099
      %1101 = vmatmul.f32.gmra.mxu0 %v894
      %v1102 = vpop.f32.mrf.mxu0
      %v1103 = vadd.f32 %v776, %v1102
      %1104 = vmatmul.f32.gmra.mxu0 %v897
      %v1105 = vpop.f32.mrf.mxu0
      %v1106 = vadd.f32 %v776, %v1105
      %1107 = vmatmul.f32.gmra.mxu0 %v900
      %v1108 = vpop.f32.mrf.mxu0
      %v1109 = vadd.f32 %v776, %v1108
      %1110 = vmatmul.f32.gmra.mxu0 %v903
      %v1111 = vpop.f32.mrf.mxu0
      %v1112 = vadd.f32 %v776, %v1111
      %1113 = vmatmul.f32.gmra.mxu0 %v906
      %v1114 = vpop.f32.mrf.mxu0
      %v1115 = vadd.f32 %v776, %v1114
      %1116 = vmatmul.f32.gmra.mxu0 %v909
      %v1117 = vpop.f32.mrf.mxu0
      %v1118 = vadd.f32 %v776, %v1117
      %1119 = vmatmul.f32.gmra.mxu0 %v912
      %v1120 = vpop.f32.mrf.mxu0
      %v1121 = vadd.f32 %v776, %v1120
      %1122 = vmatmul.f32.gmra.mxu0 %v915
      %v1123 = vpop.f32.mrf.mxu0
      %v1124 = vadd.f32 %v776, %v1123
      %1125 = vmatmul.f32.gmra.mxu0 %v918
      %v1126 = vpop.f32.mrf.mxu0
      %v1127 = vadd.f32 %v776, %v1126
      %1128 = vmatmul.f32.gmra.mxu0 %v921
      %v1129 = vpop.f32.mrf.mxu0
      %v1130 = vadd.f32 %v776, %v1129
      %1131 = vmatmul.f32.gmra.mxu0 %v924
      %v1132 = vpop.f32.mrf.mxu0
      %v1133 = vadd.f32 %v776, %v1132
      %1134 = vmatmul.f32.gmra.mxu0 %v927
      %v1135 = vpop.f32.mrf.mxu0
      %v1136 = vadd.f32 %v776, %v1135
      %1137 = vmatmul.f32.gmra.mxu0 %v930
      %v1138 = vpop.f32.mrf.mxu0
      %v1139 = vadd.f32 %v776, %v1138
      %1140 = vmatmul.f32.gmra.mxu0 %v933
      %v1141 = vpop.f32.mrf.mxu0
      %v1142 = vadd.f32 %v776, %v1141
      %1143 = vmatmul.f32.gmra.mxu0 %v936
      %v1144 = vpop.f32.mrf.mxu0
      %v1145 = vadd.f32 %v776, %v1144
      %1146 = vmatmul.f32.gmra.mxu0 %v939
      %v1147 = vpop.f32.mrf.mxu0
      %v1148 = vadd.f32 %v776, %v1147
      %1149 = vmatmul.f32.gmra.mxu0 %v942
      %v1150 = vpop.f32.mrf.mxu0
      %v1151 = vadd.f32 %v776, %v1150
      %1152 = vmatmul.f32.gmra.mxu0 %v945
      %v1153 = vpop.f32.mrf.mxu0
      %v1154 = vadd.f32 %v776, %v1153
      %1155 = vmatmul.f32.gmra.mxu0 %v948
      %v1156 = vpop.f32.mrf.mxu0
      %v1157 = vadd.f32 %v776, %v1156
      %1158 = vmatmul.f32.gmra.mxu0 %v951
      %v1159 = vpop.f32.mrf.mxu0
      %v1160 = vadd.f32 %v776, %v1159
      %1161 = vmatmul.f32.gmra.mxu0 %v954
      %v1162 = vpop.f32.mrf.mxu0
      %v1163 = vadd.f32 %v776, %v1162
      %1164 = vmatmul.f32.gmra.mxu0 %v957
      %v1165 = vpop.f32.mrf.mxu0
      %v1166 = vadd.f32 %v776, %v1165
      %1167 = vmatmul.f32.gmra.mxu0 %v960
      %v1168 = vpop.f32.mrf.mxu0
      %v1169 = vadd.f32 %v776, %v1168
      %1170 = vmatmul.f32.gmra.mxu0 %v963
      %v1171 = vpop.f32.mrf.mxu0
      %v1172 = vadd.f32 %v776, %v1171
      %1173 = vmatmul.f32.gmra.mxu0 %v966
      %v1174 = vpop.f32.mrf.mxu0
      %v1175 = vadd.f32 %v776, %v1174
      %1176 = vmatmul.f32.gmra.mxu0 %v969
      %v1177 = vpop.f32.mrf.mxu0
      %v1178 = vadd.f32 %v776, %v1177
      %1179 = vdwg.mxu0
      %vm1180 = vcmask 130048
      %1181 = vst.msk [vmem:[%s226] sm:$0xff] %vm1180, %v989
      %1182 = vst.msk [vmem:[%s226 + $0x8] sm:$0xff] %vm1180, %v992
      %1183 = vst.msk [vmem:[%s226 + $0x10] sm:$0xff] %vm1180, %v995
      %1184 = vst.msk [vmem:[%s226 + $0x18] sm:$0xff] %vm1180, %v998
      %1185 = vst.msk [vmem:[%s226 + $0x20] sm:$0xff] %vm1180, %v1001
      %1186 = vst.msk [vmem:[%s226 + $0x28] sm:$0xff] %vm1180, %v1004
      %1187 = vst.msk [vmem:[%s226 + $0x30] sm:$0xff] %vm1180, %v1007
      %1188 = vst.msk [vmem:[%s226 + $0x38] sm:$0xff] %vm1180, %v1010
      %1189 = vst.msk [vmem:[%s226 + $0x40] sm:$0xff] %vm1180, %v1013
      %1190 = vst.msk [vmem:[%s226 + $0x48] sm:$0xff] %vm1180, %v1016
      %1191 = vst.msk [vmem:[%s226 + $0x50] sm:$0xff] %vm1180, %v1019
      %1192 = vst.msk [vmem:[%s226 + $0x58] sm:$0xff] %vm1180, %v1022
      %1193 = vst.msk [vmem:[%s226 + $0x60] sm:$0xff] %vm1180, %v1025
      %1194 = vst.msk [vmem:[%s226 + $0x68] sm:$0xff] %vm1180, %v1028
      %1195 = vst.msk [vmem:[%s226 + $0x70] sm:$0xff] %vm1180, %v1031
      %1196 = vst.msk [vmem:[%s226 + $0x78] sm:$0xff] %vm1180, %v1034
      %1197 = vst.msk [vmem:[%s226 + $0x80] sm:$0xff] %vm1180, %v1037
      %1198 = vst.msk [vmem:[%s226 + $0x88] sm:$0xff] %vm1180, %v1040
      %1199 = vst.msk [vmem:[%s226 + $0x90] sm:$0xff] %vm1180, %v1043
      %1200 = vst.msk [vmem:[%s226 + $0x98] sm:$0xff] %vm1180, %v1046
      %1201 = vst.msk [vmem:[%s226 + $0xa0] sm:$0xff] %vm1180, %v1049
      %1202 = vst.msk [vmem:[%s226 + $0xa8] sm:$0xff] %vm1180, %v1052
      %1203 = vst.msk [vmem:[%s226 + $0xb0] sm:$0xff] %vm1180, %v1055
      %1204 = vst.msk [vmem:[%s226 + $0xb8] sm:$0xff] %vm1180, %v1058
      %1205 = vst.msk [vmem:[%s226 + $0xc0] sm:$0xff] %vm1180, %v1061
      %1206 = vst.msk [vmem:[%s226 + $0xc8] sm:$0xff] %vm1180, %v1064
      %1207 = vst.msk [vmem:[%s226 + $0xd0] sm:$0xff] %vm1180, %v1067
      %1208 = vst.msk [vmem:[%s226 + $0xd8] sm:$0xff] %vm1180, %v1070
      %1209 = vst.msk [vmem:[%s226 + $0xe0] sm:$0xff] %vm1180, %v1073
      %1210 = vst.msk [vmem:[%s226 + $0xe8] sm:$0xff] %vm1180, %v1076
      %1211 = vst.msk [vmem:[%s226 + $0xf0] sm:$0xff] %vm1180, %v1079
      %1212 = vst.msk [vmem:[%s226 + $0xf8] sm:$0xff] %vm1180, %v1082
      %1213 = vst.msk [vmem:[%s226 + $0x100] sm:$0xff] %vm1180, %v1085
      %1214 = vst.msk [vmem:[%s226 + $0x108] sm:$0xff] %vm1180, %v1088
      %1215 = vst.msk [vmem:[%s226 + $0x110] sm:$0xff] %vm1180, %v1091
      %1216 = vst.msk [vmem:[%s226 + $0x118] sm:$0xff] %vm1180, %v1094
      %1217 = vst.msk [vmem:[%s226 + $0x120] sm:$0xff] %vm1180, %v1097
      %1218 = vst.msk [vmem:[%s226 + $0x128] sm:$0xff] %vm1180, %v1100
      %1219 = vst.msk [vmem:[%s226 + $0x130] sm:$0xff] %vm1180, %v1103
      %1220 = vst.msk [vmem:[%s226 + $0x138] sm:$0xff] %vm1180, %v1106
      %1221 = vst.msk [vmem:[%s226 + $0x140] sm:$0xff] %vm1180, %v1109
      %1222 = vst.msk [vmem:[%s226 + $0x148] sm:$0xff] %vm1180, %v1112
      %1223 = vst.msk [vmem:[%s226 + $0x150] sm:$0xff] %vm1180, %v1115
      %1224 = vst.msk [vmem:[%s226 + $0x158] sm:$0xff] %vm1180, %v1118
      %1225 = vst.msk [vmem:[%s226 + $0x160] sm:$0xff] %vm1180, %v1121
      %1226 = vst.msk [vmem:[%s226 + $0x168] sm:$0xff] %vm1180, %v1124
      %1227 = vst.msk [vmem:[%s226 + $0x170] sm:$0xff] %vm1180, %v1127
      %1228 = vst.msk [vmem:[%s226 + $0x178] sm:$0xff] %vm1180, %v1130
      %1229 = vst.msk [vmem:[%s226 + $0x180] sm:$0xff] %vm1180, %v1133
      %1230 = vst.msk [vmem:[%s226 + $0x188] sm:$0xff] %vm1180, %v1136
      %1231 = vst.msk [vmem:[%s226 + $0x190] sm:$0xff] %vm1180, %v1139
      %1232 = vst.msk [vmem:[%s226 + $0x198] sm:$0xff] %vm1180, %v1142
      %1233 = vst.msk [vmem:[%s226 + $0x1a0] sm:$0xff] %vm1180, %v1145
      %1234 = vst.msk [vmem:[%s226 + $0x1a8] sm:$0xff] %vm1180, %v1148
      %1235 = vst.msk [vmem:[%s226 + $0x1b0] sm:$0xff] %vm1180, %v1151
      %1236 = vst.msk [vmem:[%s226 + $0x1b8] sm:$0xff] %vm1180, %v1154
      %1237 = vst.msk [vmem:[%s226 + $0x1c0] sm:$0xff] %vm1180, %v1157
      %1238 = vst.msk [vmem:[%s226 + $0x1c8] sm:$0xff] %vm1180, %v1160
      %1239 = vst.msk [vmem:[%s226 + $0x1d0] sm:$0xff] %vm1180, %v1163
      %1240 = vst.msk [vmem:[%s226 + $0x1d8] sm:$0xff] %vm1180, %v1166
      %1241 = vst.msk [vmem:[%s226 + $0x1e0] sm:$0xff] %vm1180, %v1169
      %1242 = vst.msk [vmem:[%s226 + $0x1e8] sm:$0xff] %vm1180, %v1172
      %1243 = vst.msk [vmem:[%s226 + $0x1f0] sm:$0xff] %vm1180, %v1175
      %1244 = vst.msk [vmem:[%s226 + $0x1f8] sm:$0xff] %vm1180, %v1178
      %s1245 = smul.u32 64, %s16
      %p1246 = scmp.lt.s32.totalorder %s1245, 127
      %s1247 = scalar_select %p1246, %s1245, 127
      %s1248 = smul.addr %s1247, 8
      %s1249 = scalar_lea.vmem %s5, %s1248
      // Predicated region
      $region41: #{tpu_custom_call.1} parent=39 // pred_check
        %p1250 = pneg %p144
      $region42: #{tpu_custom_call.1} parent=39 // pred_check_branch
        %1252 = sbr.rel (%p1250) target = $region44
      $region43: #{tpu_custom_call.1} parent=39 // pred_region
        %s1253 = smul.u32 64, %s16
      $region44: #{tpu_custom_call.1} parent=39 // pred_fallthru
        _
    $region40: #{tpu_custom_call.1} parent=5 // pred_fallthru
      _
    %p1254 = scmp.le.s32.totalorder 2, %s11
    // Predicated region
    $region45: #{tpu_custom_call.1} parent=5 // pred_check
      %p1255 = pneg %p1254
    $region46: #{tpu_custom_call.1} parent=5 // pred_check_branch
      %1257 = sbr.rel (%p1255) target = $region48
    $region47: #{tpu_custom_call.1} parent=5 // pred_region
      %s1258 = ssub.s32 %s11, 2
      // Predicated region
      $region49: #{tpu_custom_call.1} parent=47 // pred_check
        %p1259 = pneg %p150
      $region50: #{tpu_custom_call.1} parent=47 // pred_check_branch
        %1261 = sbr.rel (%p1259) target = $region52
      $region51: #{tpu_custom_call.1} parent=47 // pred_region
        %s1262 = smul.u32 64, %s17
        %p1263 = scmp.lt.s32.totalorder %s1262, 127
        %s1264 = scalar_select %p1263, %s1262, 127
        %s1265 = smul.addr %s1264, 8
        %s1266 = scalar_lea.vmem %s5, %s1265
      $region52: #{tpu_custom_call.1} parent=47 // pred_fallthru
        _
    $region48: #{tpu_custom_call.1} parent=5 // pred_fallthru
      _
  $region6: #{tpu_custom_call.1} parent=0 // loop_footer
    %s15 = sadd.s32 1, %s11
  $region7: #{tpu_custom_call.1} parent=0 // loop_footer_branch
    %10 = sbr.rel target = $region3
  $region8: #{tpu_custom_call.1} parent=0 // loop_exit
    _

// kernel: tpu_custom_call.1
$region0: #{tpu_custom_call.1}
  #allocation0 [shape = 'u32[]', space=smem, size = 0x4, offset = 0x4, fixed_abs, tag = 'smem constant byte address 0x4 - core index']
  #allocation1 [shape = 'u32[72,128]{1,0:T(1,128)}', space=vmem, size = 0x9000, scoped, tag = 'internal scratch']
  %s0 = inlined_call_operand.vmem [shape: f32[1024,64], index: 0, kind: input, shape index: {}]
  %s1 = inlined_call_operand.vmem [shape: f32[64,32], index: 1, kind: input, shape index: {}]
  %s2 = inlined_call_operand.vmem [shape: f32[1,32], index: 2, kind: input, shape index: {}]
  %s3 = inlined_call_operand.vmem [shape: f32[32,16], index: 3, kind: input, shape index: {}]
  %s4 = inlined_call_operand.vmem [shape: f32[1,16], index: 4, kind: input, shape index: {}]
  %s5 = inlined_call_operand.vmem [shape: f32[1024,16], index: 5, kind: output, shape index: {}]
  %s6 = sld [smem:[#allocation0]]
  $region53: #{tpu_custom_call.1} parent=0
    _
  %s8 = ssub.s32 1, %s6
  %s9 = scalar_select 0, %s8, %s6
  loop: start=0, step=1, limit=4
  $region2: #{tpu_custom_call.1} parent=0 // loop_pre_header
    _
  $region3: #{tpu_custom_call.1} parent=0 // loop_header
    %s11 = sphi 0, %s15
    %p12 = scmp.ge.s32.totalorder %s11, 4
    %s21 = sphi 0, %s23
    %s24 = sphi 0, %s21
    %s25 = sphi 0, %s24
    %s41 = sphi 0, %s25
    %s45 = sphi 0, %s45
    %s47 = sphi 0, %s45
    %s48 = sphi 0, %s47
    %s62 = sphi 0, %s48
    %s66 = sphi 0, %s66
    %s68 = sphi 0, %s66
    %s69 = sphi 0, %s68
    %s83 = sphi 0, %s69
    %s87 = sphi 0, %s87
    %s89 = sphi 0, %s87
    %s90 = sphi 0, %s89
    %s104 = sphi 0, %s90
    %s108 = sphi 0, %s108
    %s110 = sphi 0, %s108
    %s111 = sphi 0, %s110
    %s125 = sphi 0, %s111
    %s131 = sphi 0, %s133
    %s134 = sphi 0, %s131
    %s135 = sphi 0, %s134
    %s151 = sphi 0, %s135
  $region4: #{tpu_custom_call.1} parent=0 // loop_header_branch
    %14 = sbr.rel (%p12) target = $region8
  $region5: #{tpu_custom_call.1} parent=0 // loop_body
    %s16 = ssub.s32 %s11, 1
    %s17 = ssub.s32 %s11, 2
    %s18 = sadd.s32 %s11, 1
    %s19 = ssub.s32 %s11, %s18
    %p20 = scmp.eq.s32.totalorder %s19, 0
    %s22 = sadd.s32 %s21, 1
    %s23 = scalar_select %p20, %s21, %s22
    %p26 = pneg %p20
    %p27 = scmp.eq.s32.totalorder %s11, 1
    %p28 = por %p26, %p27
    %p29 = scmp.ne.s32.totalorder %s21, %s24
    %p30 = scmp.eq.s32.totalorder %s11, 0
    %p31 = por %p29, %p30
    %p32 = scmp.ne.s32.totalorder %s21, %s24
    %p33 = scmp.eq.s32.totalorder %s16, 1
    %p34 = por %p32, %p33
    %p35 = scmp.ne.s32.totalorder %s24, %s25
    %p36 = scmp.eq.s32.totalorder %s16, 0
    %p37 = por %p35, %p36
    %p38 = scmp.ne.s32.totalorder %s24, %s25
    %p39 = scmp.eq.s32.totalorder %s17, 1
    %p40 = por %p38, %p39
    %p42 = scmp.ne.s32.totalorder %s25, %s41
    %p43 = scmp.eq.s32.totalorder %s17, 0
    %p44 = por %p42, %p43
    %s46 = sadd.s32 %s45, 1
    %p49 = scmp.eq.s32.totalorder %s11, 1
    %p50 = scmp.ne.s32.totalorder %s45, %s47
    %p51 = scmp.eq.s32.totalorder %s11, 0
    %p52 = por %p50, %p51
    %p53 = scmp.ne.s32.totalorder %s45, %s47
    %p54 = scmp.eq.s32.totalorder %s16, 1
    %p55 = por %p53, %p54
    %p56 = scmp.ne.s32.totalorder %s47, %s48
    %p57 = scmp.eq.s32.totalorder %s16, 0
    %p58 = por %p56, %p57
    %p59 = scmp.ne.s32.totalorder %s47, %s48
    %p60 = scmp.eq.s32.totalorder %s17, 1
    %p61 = por %p59, %p60
    %p63 = scmp.ne.s32.totalorder %s48, %s62
    %p64 = scmp.eq.s32.totalorder %s17, 0
    %p65 = por %p63, %p64
    %s67 = sadd.s32 %s66, 1
    %p70 = scmp.eq.s32.totalorder %s11, 1
    %p71 = scmp.ne.s32.totalorder %s66, %s68
    %p72 = scmp.eq.s32.totalorder %s11, 0
    %p73 = por %p71, %p72
    %p74 = scmp.ne.s32.totalorder %s66, %s68
    %p75 = scmp.eq.s32.totalorder %s16, 1
    %p76 = por %p74, %p75
    %p77 = scmp.ne.s32.totalorder %s68, %s69
    %p78 = scmp.eq.s32.totalorder %s16, 0
    %p79 = por %p77, %p78
    %p80 = scmp.ne.s32.totalorder %s68, %s69
    %p81 = scmp.eq.s32.totalorder %s17, 1
    %p82 = por %p80, %p81
    %p84 = scmp.ne.s32.totalorder %s69, %s83
    %p85 = scmp.eq.s32.totalorder %s17, 0
    %p86 = por %p84, %p85
    %s88 = sadd.s32 %s87, 1
    %p91 = scmp.eq.s32.totalorder %s11, 1
    %p92 = scmp.ne.s32.totalorder %s87, %s89
    %p93 = scmp.eq.s32.totalorder %s11, 0
    %p94 = por %p92, %p93
    %p95 = scmp.ne.s32.totalorder %s87, %s89
    %p96 = scmp.eq.s32.totalorder %s16, 1
    %p97 = por %p95, %p96
    %p98 = scmp.ne.s32.totalorder %s89, %s90
    %p99 = scmp.eq.s32.totalorder %s16, 0
    %p100 = por %p98, %p99
    %p101 = scmp.ne.s32.totalorder %s89, %s90
    %p102 = scmp.eq.s32.totalorder %s17, 1
    %p103 = por %p101, %p102
    %p105 = scmp.ne.s32.totalorder %s90, %s104
    %p106 = scmp.eq.s32.totalorder %s17, 0
    %p107 = por %p105, %p106
    %s109 = sadd.s32 %s108, 1
    %p112 = scmp.eq.s32.totalorder %s11, 1
    %p113 = scmp.ne.s32.totalorder %s108, %s110
    %p114 = scmp.eq.s32.totalorder %s11, 0
    %p115 = por %p113, %p114
    %p116 = scmp.ne.s32.totalorder %s108, %s110
    %p117 = scmp.eq.s32.totalorder %s16, 1
    %p118 = por %p116, %p117
    %p119 = scmp.ne.s32.totalorder %s110, %s111
    %p120 = scmp.eq.s32.totalorder %s16, 0
    %p121 = por %p119, %p120
    %p122 = scmp.ne.s32.totalorder %s110, %s111
    %p123 = scmp.eq.s32.totalorder %s17, 1
    %p124 = por %p122, %p123
    %p126 = scmp.ne.s32.totalorder %s111, %s125
    %p127 = scmp.eq.s32.totalorder %s17, 0
    %p128 = por %p126, %p127
    %s129 = ssub.s32 %s11, %s18
    %p130 = scmp.eq.s32.totalorder %s129, 0
    %s132 = sadd.s32 %s131, 1
    %s133 = scalar_select %p130, %s131, %s132
    %p136 = pneg %p130
    %p137 = scmp.eq.s32.totalorder %s11, 1
    %p138 = por %p136, %p137
    %p139 = scmp.ne.s32.totalorder %s131, %s134
    %p140 = scmp.eq.s32.totalorder %s11, 0
    %p141 = por %p139, %p140
    %p142 = scmp.ne.s32.totalorder %s131, %s134
    %p143 = scmp.eq.s32.totalorder %s16, 1
    %p144 = por %p142, %p143
    %p145 = scmp.ne.s32.totalorder %s134, %s135
    %p146 = scmp.eq.s32.totalorder %s16, 0
    %p147 = por %p145, %p146
    %p148 = scmp.ne.s32.totalorder %s134, %s135
    %p149 = scmp.eq.s32.totalorder %s17, 1
    %p150 = por %p148, %p149
    %p152 = scmp.ne.s32.totalorder %s135, %s151
    %p153 = scmp.eq.s32.totalorder %s17, 0
    %p154 = por %p152, %p153
    %p155 = scmp.le.s32.totalorder 1, %s11
    %p156 = scmp.lt.s32.totalorder %s11, 3
    %p157 = pnand %p155, %p156
    %p158 = pneg %p157
    // Predicated region
    $region9: #{tpu_custom_call.1} parent=5 // pred_check
      _
    $region10: #{tpu_custom_call.1} parent=5 // pred_check_branch
      %160 = sbr.rel (%p157) target = $region12
    $region11: #{tpu_custom_call.1} parent=5 // pred_region
      %s161 = ssub.s32 %s11, 1
      // Predicated region
      $region13: #{tpu_custom_call.1} parent=11 // pred_check
        %p162 = pneg %p58
      $region14: #{tpu_custom_call.1} parent=11 // pred_check_branch
        %164 = sbr.rel (%p162) target = $region16
      $region15: #{tpu_custom_call.1} parent=11 // pred_region
        _
      $region16: #{tpu_custom_call.1} parent=11 // pred_fallthru
        _
      // Predicated region
      $region17: #{tpu_custom_call.1} parent=11 // pred_check
        %p165 = pneg %p79
      $region18: #{tpu_custom_call.1} parent=11 // pred_check_branch
        %167 = sbr.rel (%p165) target = $region20
      $region19: #{tpu_custom_call.1} parent=11 // pred_region
        _
      $region20: #{tpu_custom_call.1} parent=11 // pred_fallthru
        _
      // Predicated region
      $region21: #{tpu_custom_call.1} parent=11 // pred_check
        %p168 = pneg %p100
      $region22: #{tpu_custom_call.1} parent=11 // pred_check_branch
        %170 = sbr.rel (%p168) target = $region24
      $region23: #{tpu_custom_call.1} parent=11 // pred_region
        _
      $region24: #{tpu_custom_call.1} parent=11 // pred_fallthru
        _
      // Predicated region
      $region25: #{tpu_custom_call.1} parent=11 // pred_check
        %p171 = pneg %p121
      $region26: #{tpu_custom_call.1} parent=11 // pred_check_branch
        %173 = sbr.rel (%p171) target = $region28
      $region27: #{tpu_custom_call.1} parent=11 // pred_region
        _
      $region28: #{tpu_custom_call.1} parent=11 // pred_fallthru
        _
    $region12: #{tpu_custom_call.1} parent=5 // pred_fallthru
      _
    %p174 = scmp.lt.s32.totalorder %s11, 2
    // Predicated region
    $region29: #{tpu_custom_call.1} parent=5 // pred_check
      %p175 = pneg %p174
    $region30: #{tpu_custom_call.1} parent=5 // pred_check_branch
      %177 = sbr.rel (%p175) target = $region32
    $region31: #{tpu_custom_call.1} parent=5 // pred_region
      // Predicated region
      $region33: #{tpu_custom_call.1} parent=31 // pred_check
        %p178 = pneg %p31
      $region34: #{tpu_custom_call.1} parent=31 // pred_check_branch
        %180 = sbr.rel (%p178) target = $region36
      $region35: #{tpu_custom_call.1} parent=31 // pred_region
        %s181 = smul.u32 64, %s11
        %p182 = scmp.lt.s32.totalorder %s181, 127
        %s183 = scalar_select %p182, %s181, 127
        %s184 = smul.addr %s183, 8
        %s185 = scalar_lea.vmem %s0, %s184
        %s186 = smul.u32 64, %s11
      $region36: #{tpu_custom_call.1} parent=31 // pred_fallthru
        _
    $region32: #{tpu_custom_call.1} parent=5 // pred_fallthru
      _
    %p187 = scmp.le.s32.totalorder 1, %s11
    %p188 = scmp.lt.s32.totalorder %s11, 3
    %p189 = pnand %p187, %p188
    %p190 = pneg %p189
    // Predicated region
    $region37: #{tpu_custom_call.1} parent=5 // pred_check
      _
    $region38: #{tpu_custom_call.1} parent=5 // pred_check_branch
      %192 = sbr.rel (%p189) target = $region40
    $region39: #{tpu_custom_call.1} parent=5 // pred_region
      %s193 = ssub.s32 %s11, 1
      %s194 = smul.u32 64, %s16
      %p195 = scmp.lt.s32.totalorder %s194, 127
      %s196 = scalar_select %p195, %s194, 127
      %s197 = smul.addr %s196, 8
      %s198 = scalar_lea.vmem %s0, %s197
      %p199 = pneg %p37
      %p200 = pneg %p34
      %p201 = pneg %p58
      %p202 = pneg %p55
      %p203 = pneg %p79
      %p204 = pneg %p76
      %p205 = pneg %p100
      %p206 = pneg %p97
      %p207 = pneg %p121
      %p208 = pneg %p118
      %p209 = pneg %p147
      %p210 = pneg %p144
      %s211 = smul.u32 64, %s16
      %p212 = scmp.lt.s32.totalorder %s211, 127
      %s213 = scalar_select %p212, %s211, 127
      %s214 = smul.addr %s213, 8
      %s215 = scalar_lea.vmem %s5, %s214
      %s216 = smul.u32 64, %s16
      %p217 = scmp.lt.s32.totalorder %s216, 127
      %s218 = scalar_select %p217, %s216, 127
      %s219 = smul.addr %s218, 8
      %s220 = scalar_lea.vmem %s0, %s219
      %s221 = smul.u32 64, %s16
      %s222 = smul.u32 64, %s16
      %p223 = scmp.lt.s32.totalorder %s222, 127
      %s224 = scalar_select %p223, %s222, 127
      %s225 = smul.addr %s224, 8
      %s226 = scalar_lea.vmem %s5, %s225
      %s227 = smul.u32 64, %s16
      %v228 = vld [vmem:[%s220] sm:$0xff]
      %v229 = vld [vmem:[%s220 + $0x8] sm:$0xff]
      %v230 = vld [vmem:[%s220 + $0x10] sm:$0xff]
      %v231 = vld [vmem:[%s220 + $0x18] sm:$0xff]
      %v232 = vld [vmem:[%s220 + $0x20] sm:$0xff]
      %v233 = vld [vmem:[%s220 + $0x28] sm:$0xff]
      %v234 = vld [vmem:[%s220 + $0x30] sm:$0xff]
      %v235 = vld [vmem:[%s220 + $0x38] sm:$0xff]
      %v236 = vld [vmem:[%s220 + $0x40] sm:$0xff]
      %v237 = vld [vmem:[%s220 + $0x48] sm:$0xff]
      %v238 = vld [vmem:[%s220 + $0x50] sm:$0xff]
      %v239 = vld [vmem:[%s220 + $0x58] sm:$0xff]
      %v240 = vld [vmem:[%s220 + $0x60] sm:$0xff]
      %v241 = vld [vmem:[%s220 + $0x68] sm:$0xff]
      %v242 = vld [vmem:[%s220 + $0x70] sm:$0xff]
      %v243 = vld [vmem:[%s220 + $0x78] sm:$0xff]
      %v244 = vld [vmem:[%s220 + $0x80] sm:$0xff]
      %v245 = vld [vmem:[%s220 + $0x88] sm:$0xff]
      %v246 = vld [vmem:[%s220 + $0x90] sm:$0xff]
      %v247 = vld [vmem:[%s220 + $0x98] sm:$0xff]
      %v248 = vld [vmem:[%s220 + $0xa0] sm:$0xff]
      %v249 = vld [vmem:[%s220 + $0xa8] sm:$0xff]
      %v250 = vld [vmem:[%s220 + $0xb0] sm:$0xff]
      %v251 = vld [vmem:[%s220 + $0xb8] sm:$0xff]
      %v252 = vld [vmem:[%s220 + $0xc0] sm:$0xff]
      %v253 = vld [vmem:[%s220 + $0xc8] sm:$0xff]
      %v254 = vld [vmem:[%s220 + $0xd0] sm:$0xff]
      %v255 = vld [vmem:[%s220 + $0xd8] sm:$0xff]
      %v256 = vld [vmem:[%s220 + $0xe0] sm:$0xff]
      %v257 = vld [vmem:[%s220 + $0xe8] sm:$0xff]
      %v258 = vld [vmem:[%s220 + $0xf0] sm:$0xff]
      %v259 = vld [vmem:[%s220 + $0xf8] sm:$0xff]
      %v260 = vld [vmem:[%s220 + $0x100] sm:$0xff]
      %v261 = vld [vmem:[%s220 + $0x108] sm:$0xff]
      %v262 = vld [vmem:[%s220 + $0x110] sm:$0xff]
      %v263 = vld [vmem:[%s220 + $0x118] sm:$0xff]
      %v264 = vld [vmem:[%s220 + $0x120] sm:$0xff]
      %v265 = vld [vmem:[%s220 + $0x128] sm:$0xff]
      %v266 = vld [vmem:[%s220 + $0x130] sm:$0xff]
      %v267 = vld [vmem:[%s220 + $0x138] sm:$0xff]
      %v268 = vld [vmem:[%s220 + $0x140] sm:$0xff]
      %v269 = vld [vmem:[%s220 + $0x148] sm:$0xff]
      %v270 = vld [vmem:[%s220 + $0x150] sm:$0xff]
      %v271 = vld [vmem:[%s220 + $0x158] sm:$0xff]
      %v272 = vld [vmem:[%s220 + $0x160] sm:$0xff]
      %v273 = vld [vmem:[%s220 + $0x168] sm:$0xff]
      %v274 = vld [vmem:[%s220 + $0x170] sm:$0xff]
      %v275 = vld [vmem:[%s220 + $0x178] sm:$0xff]
      %v276 = vld [vmem:[%s220 + $0x180] sm:$0xff]
      %v277 = vld [vmem:[%s220 + $0x188] sm:$0xff]
      %v278 = vld [vmem:[%s220 + $0x190] sm:$0xff]
      %v279 = vld [vmem:[%s220 + $0x198] sm:$0xff]
      %v280 = vld [vmem:[%s220 + $0x1a0] sm:$0xff]
      %v281 = vld [vmem:[%s220 + $0x1a8] sm:$0xff]
      %v282 = vld [vmem:[%s220 + $0x1b0] sm:$0xff]
      %v283 = vld [vmem:[%s220 + $0x1b8] sm:$0xff]
      %v284 = vld [vmem:[%s220 + $0x1c0] sm:$0xff]
      %v285 = vld [vmem:[%s220 + $0x1c8] sm:$0xff]
      %v286 = vld [vmem:[%s220 + $0x1d0] sm:$0xff]
      %v287 = vld [vmem:[%s220 + $0x1d8] sm:$0xff]
      %v288 = vld [vmem:[%s220 + $0x1e0] sm:$0xff]
      %v289 = vld [vmem:[%s220 + $0x1e8] sm:$0xff]
      %v290 = vld [vmem:[%s220 + $0x1f0] sm:$0xff]
      %v291 = vld [vmem:[%s220 + $0x1f8] sm:$0xff]
      %v292 = vld [vmem:[%s1] sm:$0xff]
      %v293 = vld [vmem:[%s1 + $0x8] sm:$0xff]
      %v294 = vld [vmem:[%s1 + $0x10] sm:$0xff]
      %v295 = vld [vmem:[%s1 + $0x18] sm:$0xff]
      %v296 = vld [vmem:[%s1 + $0x20] sm:$0xff]
      %v297 = vld [vmem:[%s1 + $0x28] sm:$0xff]
      %v298 = vld [vmem:[%s1 + $0x30] sm:$0xff]
      %v299 = vld [vmem:[%s1 + $0x38] sm:$0xff]
      %v300 = vld [vmem:[%s2] sm:$0x1]
      %v302 = vperm.slane %v300, 0
      %vm304 = vcmask 523264
      %v306 = vsel %vm304, %v228, 0
      %v309 = vsel %vm304, %v229, 0
      %v312 = vsel %vm304, %v230, 0
      %v315 = vsel %vm304, %v231, 0
      %v318 = vsel %vm304, %v232, 0
      %v321 = vsel %vm304, %v233, 0
      %v324 = vsel %vm304, %v234, 0
      %v327 = vsel %vm304, %v235, 0
      %v330 = vsel %vm304, %v236, 0
      %v333 = vsel %vm304, %v237, 0
      %v336 = vsel %vm304, %v238, 0
      %v339 = vsel %vm304, %v239, 0
      %v342 = vsel %vm304, %v240, 0
      %v345 = vsel %vm304, %v241, 0
      %v348 = vsel %vm304, %v242, 0
      %v351 = vsel %vm304, %v243, 0
      %v354 = vsel %vm304, %v244, 0
      %v357 = vsel %vm304, %v245, 0
      %v360 = vsel %vm304, %v246, 0
      %v363 = vsel %vm304, %v247, 0
      %v366 = vsel %vm304, %v248, 0
      %v369 = vsel %vm304, %v249, 0
      %v372 = vsel %vm304, %v250, 0
      %v375 = vsel %vm304, %v251, 0
      %v378 = vsel %vm304, %v252, 0
      %v381 = vsel %vm304, %v253, 0
      %v384 = vsel %vm304, %v254, 0
      %v387 = vsel %vm304, %v255, 0
      %v390 = vsel %vm304, %v256, 0
      %v393 = vsel %vm304, %v257, 0
      %v396 = vsel %vm304, %v258, 0
      %v399 = vsel %vm304, %v259, 0
      %v402 = vsel %vm304, %v260, 0
      %v405 = vsel %vm304, %v261, 0
      %v408 = vsel %vm304, %v262, 0
      %v411 = vsel %vm304, %v263, 0
      %v414 = vsel %vm304, %v264, 0
      %v417 = vsel %vm304, %v265, 0
      %v420 = vsel %vm304, %v266, 0
      %v423 = vsel %vm304, %v267, 0
      %v426 = vsel %vm304, %v268, 0
      %v429 = vsel %vm304, %v269, 0
      %v432 = vsel %vm304, %v270, 0
      %v435 = vsel %vm304, %v271, 0
      %v438 = vsel %vm304, %v272, 0
      %v441 = vsel %vm304, %v273, 0
      %v444 = vsel %vm304, %v274, 0
      %v447 = vsel %vm304, %v275, 0
      %v450 = vsel %vm304, %v276, 0
      %v453 = vsel %vm304, %v277, 0
      %v456 = vsel %vm304, %v278, 0
      %v459 = vsel %vm304, %v279, 0
      %v462 = vsel %vm304, %v280, 0
      %v465 = vsel %vm304, %v281, 0
      %v468 = vsel %vm304, %v282, 0
      %v471 = vsel %vm304, %v283, 0
      %v474 = vsel %vm304, %v284, 0
      %v477 = vsel %vm304, %v285, 0
      %v480 = vsel %vm304, %v286, 0
      %v483 = vsel %vm304, %v287, 0
      %v486 = vsel %vm304, %v288, 0
      %v489 = vsel %vm304, %v289, 0
      %v492 = vsel %vm304, %v290, 0
      %v495 = vsel %vm304, %v291, 0
      %497 = vmatpush.msra.mxu0 0.0
      %498 = vmatpush.msra.mxu0 0.0
      %499 = vmatpush.msra.mxu0 0.0
      %500 = vmatpush.msra.mxu0 0.0
      %501 = vmatpush.msra.mxu0 0.0
      %502 = vmatpush.msra.mxu0 0.0
      %503 = vmatpush.msra.mxu0 0.0
      %504 = vmatpush.msra.mxu0 0.0
      %505 = vmatpush.msra.mxu0 %v299
      %506 = vmatpush.msra.mxu0 %v298
      %507 = vmatpush.msra.mxu0 %v297
      %508 = vmatpush.msra.mxu0 %v296
      %509 = vmatpush.msra.mxu0 %v295
      %510 = vmatpush.msra.mxu0 %v294
      %511 = vmatpush.msra.mxu0 %v293
      %512 = vmatpush.msra.mxu0 %v292
      %513 = vmatmul.f32.gmra.mxu0 %v306
      %v514 = vpop.f32.mrf.mxu0
      %v515 = vadd.f32 %v302, %v514
      %516 = vmatmul.f32.gmra.mxu0 %v309
      %v517 = vpop.f32.mrf.mxu0
      %v518 = vadd.f32 %v302, %v517
      %519 = vmatmul.f32.gmra.mxu0 %v312
      %v520 = vpop.f32.mrf.mxu0
      %v521 = vadd.f32 %v302, %v520
      %522 = vmatmul.f32.gmra.mxu0 %v315
      %v523 = vpop.f32.mrf.mxu0
      %v524 = vadd.f32 %v302, %v523
      %525 = vmatmul.f32.gmra.mxu0 %v318
      %v526 = vpop.f32.mrf.mxu0
      %v527 = vadd.f32 %v302, %v526
      %528 = vmatmul.f32.gmra.mxu0 %v321
      %v529 = vpop.f32.mrf.mxu0
      %v530 = vadd.f32 %v302, %v529
      %531 = vmatmul.f32.gmra.mxu0 %v324
      %v532 = vpop.f32.mrf.mxu0
      %v533 = vadd.f32 %v302, %v532
      %534 = vmatmul.f32.gmra.mxu0 %v327
      %v535 = vpop.f32.mrf.mxu0
      %v536 = vadd.f32 %v302, %v535
      %537 = vmatmul.f32.gmra.mxu0 %v330
      %v538 = vpop.f32.mrf.mxu0
      %v539 = vadd.f32 %v302, %v538
      %540 = vmatmul.f32.gmra.mxu0 %v333
      %v541 = vpop.f32.mrf.mxu0
      %v542 = vadd.f32 %v302, %v541
      %543 = vmatmul.f32.gmra.mxu0 %v336
      %v544 = vpop.f32.mrf.mxu0
      %v545 = vadd.f32 %v302, %v544
      %546 = vmatmul.f32.gmra.mxu0 %v339
      %v547 = vpop.f32.mrf.mxu0
      %v548 = vadd.f32 %v302, %v547
      %549 = vmatmul.f32.gmra.mxu0 %v342
      %v550 = vpop.f32.mrf.mxu0
      %v551 = vadd.f32 %v302, %v550
      %552 = vmatmul.f32.gmra.mxu0 %v345
      %v553 = vpop.f32.mrf.mxu0
      %v554 = vadd.f32 %v302, %v553
      %555 = vmatmul.f32.gmra.mxu0 %v348
      %v556 = vpop.f32.mrf.mxu0
      %v557 = vadd.f32 %v302, %v556
      %558 = vmatmul.f32.gmra.mxu0 %v351
      %v559 = vpop.f32.mrf.mxu0
      %v560 = vadd.f32 %v302, %v559
      %561 = vmatmul.f32.gmra.mxu0 %v354
      %v562 = vpop.f32.mrf.mxu0
      %v563 = vadd.f32 %v302, %v562
      %564 = vmatmul.f32.gmra.mxu0 %v357
      %v565 = vpop.f32.mrf.mxu0
      %v566 = vadd.f32 %v302, %v565
      %567 = vmatmul.f32.gmra.mxu0 %v360
      %v568 = vpop.f32.mrf.mxu0
      %v569 = vadd.f32 %v302, %v568
      %570 = vmatmul.f32.gmra.mxu0 %v363
      %v571 = vpop.f32.mrf.mxu0
      %v572 = vadd.f32 %v302, %v571
      %573 = vmatmul.f32.gmra.mxu0 %v366
      %v574 = vpop.f32.mrf.mxu0
      %v575 = vadd.f32 %v302, %v574
      %576 = vmatmul.f32.gmra.mxu0 %v369
      %v577 = vpop.f32.mrf.mxu0
      %v578 = vadd.f32 %v302, %v577
      %579 = vmatmul.f32.gmra.mxu0 %v372
      %v580 = vpop.f32.mrf.mxu0
      %v581 = vadd.f32 %v302, %v580
      %582 = vmatmul.f32.gmra.mxu0 %v375
      %v583 = vpop.f32.mrf.mxu0
      %v584 = vadd.f32 %v302, %v583
      %585 = vmatmul.f32.gmra.mxu0 %v378
      %v586 = vpop.f32.mrf.mxu0
      %v587 = vadd.f32 %v302, %v586
      %588 = vmatmul.f32.gmra.mxu0 %v381
      %v589 = vpop.f32.mrf.mxu0
      %v590 = vadd.f32 %v302, %v589
      %591 = vmatmul.f32.gmra.mxu0 %v384
      %v592 = vpop.f32.mrf.mxu0
      %v593 = vadd.f32 %v302, %v592
      %594 = vmatmul.f32.gmra.mxu0 %v387
      %v595 = vpop.f32.mrf.mxu0
      %v596 = vadd.f32 %v302, %v595
      %597 = vmatmul.f32.gmra.mxu0 %v390
      %v598 = vpop.f32.mrf.mxu0
      %v599 = vadd.f32 %v302, %v598
      %600 = vmatmul.f32.gmra.mxu0 %v393
      %v601 = vpop.f32.mrf.mxu0
      %v602 = vadd.f32 %v302, %v601
      %603 = vmatmul.f32.gmra.mxu0 %v396
      %v604 = vpop.f32.mrf.mxu0
      %v605 = vadd.f32 %v302, %v604
      %606 = vmatmul.f32.gmra.mxu0 %v399
      %v607 = vpop.f32.mrf.mxu0
      %v608 = vadd.f32 %v302, %v607
      %609 = vmatmul.f32.gmra.mxu0 %v402
      %v610 = vpop.f32.mrf.mxu0
      %v611 = vadd.f32 %v302, %v610
      %612 = vmatmul.f32.gmra.mxu0 %v405
      %v613 = vpop.f32.mrf.mxu0
      %v614 = vadd.f32 %v302, %v613
      %615 = vmatmul.f32.gmra.mxu0 %v408
      %v616 = vpop.f32.mrf.mxu0
      %v617 = vadd.f32 %v302, %v616
      %618 = vmatmul.f32.gmra.mxu0 %v411
      %v619 = vpop.f32.mrf.mxu0
      %v620 = vadd.f32 %v302, %v619
      %621 = vmatmul.f32.gmra.mxu0 %v414
      %v622 = vpop.f32.mrf.mxu0
      %v623 = vadd.f32 %v302, %v622
      %624 = vmatmul.f32.gmra.mxu0 %v417
      %v625 = vpop.f32.mrf.mxu0
      %v626 = vadd.f32 %v302, %v625
      %627 = vmatmul.f32.gmra.mxu0 %v420
      %v628 = vpop.f32.mrf.mxu0
      %v629 = vadd.f32 %v302, %v628
      %630 = vmatmul.f32.gmra.mxu0 %v423
      %v631 = vpop.f32.mrf.mxu0
      %v632 = vadd.f32 %v302, %v631
      %633 = vmatmul.f32.gmra.mxu0 %v426
      %v634 = vpop.f32.mrf.mxu0
      %v635 = vadd.f32 %v302, %v634
      %636 = vmatmul.f32.gmra.mxu0 %v429
      %v637 = vpop.f32.mrf.mxu0
      %v638 = vadd.f32 %v302, %v637
      %639 = vmatmul.f32.gmra.mxu0 %v432
      %v640 = vpop.f32.mrf.mxu0
      %v641 = vadd.f32 %v302, %v640
      %642 = vmatmul.f32.gmra.mxu0 %v435
      %v643 = vpop.f32.mrf.mxu0
      %v644 = vadd.f32 %v302, %v643
      %645 = vmatmul.f32.gmra.mxu0 %v438
      %v646 = vpop.f32.mrf.mxu0
      %v647 = vadd.f32 %v302, %v646
      %648 = vmatmul.f32.gmra.mxu0 %v441
      %v649 = vpop.f32.mrf.mxu0
      %v650 = vadd.f32 %v302, %v649
      %651 = vmatmul.f32.gmra.mxu0 %v444
      %v652 = vpop.f32.mrf.mxu0
      %v653 = vadd.f32 %v302, %v652
      %654 = vmatmul.f32.gmra.mxu0 %v447
      %v655 = vpop.f32.mrf.mxu0
      %v656 = vadd.f32 %v302, %v655
      %657 = vmatmul.f32.gmra.mxu0 %v450
      %v658 = vpop.f32.mrf.mxu0
      %v659 = vadd.f32 %v302, %v658
      %660 = vmatmul.f32.gmra.mxu0 %v453
      %v661 = vpop.f32.mrf.mxu0
      %v662 = vadd.f32 %v302, %v661
      %663 = vmatmul.f32.gmra.mxu0 %v456
      %v664 = vpop.f32.mrf.mxu0
      %v665 = vadd.f32 %v302, %v664
      %666 = vmatmul.f32.gmra.mxu0 %v459
      %v667 = vpop.f32.mrf.mxu0
      %v668 = vadd.f32 %v302, %v667
      %669 = vmatmul.f32.gmra.mxu0 %v462
      %v670 = vpop.f32.mrf.mxu0
      %v671 = vadd.f32 %v302, %v670
      %672 = vmatmul.f32.gmra.mxu0 %v465
      %v673 = vpop.f32.mrf.mxu0
      %v674 = vadd.f32 %v302, %v673
      %675 = vmatmul.f32.gmra.mxu0 %v468
      %v676 = vpop.f32.mrf.mxu0
      %v677 = vadd.f32 %v302, %v676
      %678 = vmatmul.f32.gmra.mxu0 %v471
      %v679 = vpop.f32.mrf.mxu0
      %v680 = vadd.f32 %v302, %v679
      %681 = vmatmul.f32.gmra.mxu0 %v474
      %v682 = vpop.f32.mrf.mxu0
      %v683 = vadd.f32 %v302, %v682
      %684 = vmatmul.f32.gmra.mxu0 %v477
      %v685 = vpop.f32.mrf.mxu0
      %v686 = vadd.f32 %v302, %v685
      %687 = vmatmul.f32.gmra.mxu0 %v480
      %v688 = vpop.f32.mrf.mxu0
      %v689 = vadd.f32 %v302, %v688
      %690 = vmatmul.f32.gmra.mxu0 %v483
      %v691 = vpop.f32.mrf.mxu0
      %v692 = vadd.f32 %v302, %v691
      %693 = vmatmul.f32.gmra.mxu0 %v486
      %v694 = vpop.f32.mrf.mxu0
      %v695 = vadd.f32 %v302, %v694
      %696 = vmatmul.f32.gmra.mxu0 %v489
      %v697 = vpop.f32.mrf.mxu0
      %v698 = vadd.f32 %v302, %v697
      %699 = vmatmul.f32.gmra.mxu0 %v492
      %v700 = vpop.f32.mrf.mxu0
      %v701 = vadd.f32 %v302, %v700
      %702 = vmatmul.f32.gmra.mxu0 %v495
      %v703 = vpop.f32.mrf.mxu0
      %v704 = vadd.f32 %v302, %v703
      %705 = vdwg.mxu0
      %v706 = vmax.f32 %v515, 0.0
      %v707 = vmax.f32 %v518, 0.0
      %v708 = vmax.f32 %v521, 0.0
      %v709 = vmax.f32 %v524, 0.0
      %v710 = vmax.f32 %v527, 0.0
      %v711 = vmax.f32 %v530, 0.0
      %v712 = vmax.f32 %v533, 0.0
      %v713 = vmax.f32 %v536, 0.0
      %v714 = vmax.f32 %v539, 0.0
      %v715 = vmax.f32 %v542, 0.0
      %v716 = vmax.f32 %v545, 0.0
      %v717 = vmax.f32 %v548, 0.0
      %v718 = vmax.f32 %v551, 0.0
      %v719 = vmax.f32 %v554, 0.0
      %v720 = vmax.f32 %v557, 0.0
      %v721 = vmax.f32 %v560, 0.0
      %v722 = vmax.f32 %v563, 0.0
      %v723 = vmax.f32 %v566, 0.0
      %v724 = vmax.f32 %v569, 0.0
      %v725 = vmax.f32 %v572, 0.0
      %v726 = vmax.f32 %v575, 0.0
      %v727 = vmax.f32 %v578, 0.0
      %v728 = vmax.f32 %v581, 0.0
      %v729 = vmax.f32 %v584, 0.0
      %v730 = vmax.f32 %v587, 0.0
      %v731 = vmax.f32 %v590, 0.0
      %v732 = vmax.f32 %v593, 0.0
      %v733 = vmax.f32 %v596, 0.0
      %v734 = vmax.f32 %v599, 0.0
      %v735 = vmax.f32 %v602, 0.0
      %v736 = vmax.f32 %v605, 0.0
      %v737 = vmax.f32 %v608, 0.0
      %v738 = vmax.f32 %v611, 0.0
      %v739 = vmax.f32 %v614, 0.0
      %v740 = vmax.f32 %v617, 0.0
      %v741 = vmax.f32 %v620, 0.0
      %v742 = vmax.f32 %v623, 0.0
      %v743 = vmax.f32 %v626, 0.0
      %v744 = vmax.f32 %v629, 0.0
      %v745 = vmax.f32 %v632, 0.0
      %v746 = vmax.f32 %v635, 0.0
      %v747 = vmax.f32 %v638, 0.0
      %v748 = vmax.f32 %v641, 0.0
      %v749 = vmax.f32 %v644, 0.0
      %v750 = vmax.f32 %v647, 0.0
      %v751 = vmax.f32 %v650, 0.0
      %v752 = vmax.f32 %v653, 0.0
      %v753 = vmax.f32 %v656, 0.0
      %v754 = vmax.f32 %v659, 0.0
      %v755 = vmax.f32 %v662, 0.0
      %v756 = vmax.f32 %v665, 0.0
      %v757 = vmax.f32 %v668, 0.0
      %v758 = vmax.f32 %v671, 0.0
      %v759 = vmax.f32 %v674, 0.0
      %v760 = vmax.f32 %v677, 0.0
      %v761 = vmax.f32 %v680, 0.0
      %v762 = vmax.f32 %v683, 0.0
      %v763 = vmax.f32 %v686, 0.0
      %v764 = vmax.f32 %v689, 0.0
      %v765 = vmax.f32 %v692, 0.0
      %v766 = vmax.f32 %v695, 0.0
      %v767 = vmax.f32 %v698, 0.0
      %v768 = vmax.f32 %v701, 0.0
      %v769 = vmax.f32 %v704, 0.0
      %v770 = vld [vmem:[%s3] sm:$0xff]
      %v771 = vld [vmem:[%s3 + $0x8] sm:$0xff]
      %v772 = vld [vmem:[%s3 + $0x10] sm:$0xff]
      %v773 = vld [vmem:[%s3 + $0x18] sm:$0xff]
      %v774 = vld [vmem:[%s4] sm:$0x1]
      %v776 = vperm.slane %v774, 0
      %vm778 = vcmask 261120
      %v780 = vsel %vm778, %v706, 0
      %v783 = vsel %vm778, %v707, 0
      %v786 = vsel %vm778, %v708, 0
      %v789 = vsel %vm778, %v709, 0
      %v792 = vsel %vm778, %v710, 0
      %v795 = vsel %vm778, %v711, 0
      %v798 = vsel %vm778, %v712, 0
      %v801 = vsel %vm778, %v713, 0
      %v804 = vsel %vm778, %v714, 0
      %v807 = vsel %vm778, %v715, 0
      %v810 = vsel %vm778, %v716, 0
      %v813 = vsel %vm778, %v717, 0
      %v816 = vsel %vm778, %v718, 0
      %v819 = vsel %vm778, %v719, 0
      %v822 = vsel %vm778, %v720, 0
      %v825 = vsel %vm778, %v721, 0
      %v828 = vsel %vm778, %v722, 0
      %v831 = vsel %vm778, %v723, 0
      %v834 = vsel %vm778, %v724, 0
      %v837 = vsel %vm778, %v725, 0
      %v840 = vsel %vm778, %v726, 0
      %v843 = vsel %vm778, %v727, 0
      %v846 = vsel %vm778, %v728, 0
      %v849 = vsel %vm778, %v729, 0
      %v852 = vsel %vm778, %v730, 0
      %v855 = vsel %vm778, %v731, 0
      %v858 = vsel %vm778, %v732, 0
      %v861 = vsel %vm778, %v733, 0
      %v864 = vsel %vm778, %v734, 0
      %v867 = vsel %vm778, %v735, 0
      %v870 = vsel %vm778, %v736, 0
      %v873 = vsel %vm778, %v737, 0
      %v876 = vsel %vm778, %v738, 0
      %v879 = vsel %vm778, %v739, 0
      %v882 = vsel %vm778, %v740, 0
      %v885 = vsel %vm778, %v741, 0
      %v888 = vsel %vm778, %v742, 0
      %v891 = vsel %vm778, %v743, 0
      %v894 = vsel %vm778, %v744, 0
      %v897 = vsel %vm778, %v745, 0
      %v900 = vsel %vm778, %v746, 0
      %v903 = vsel %vm778, %v747, 0
      %v906 = vsel %vm778, %v748, 0
      %v909 = vsel %vm778, %v749, 0
      %v912 = vsel %vm778, %v750, 0
      %v915 = vsel %vm778, %v751, 0
      %v918 = vsel %vm778, %v752, 0
      %v921 = vsel %vm778, %v753, 0
      %v924 = vsel %vm778, %v754, 0
      %v927 = vsel %vm778, %v755, 0
      %v930 = vsel %vm778, %v756, 0
      %v933 = vsel %vm778, %v757, 0
      %v936 = vsel %vm778, %v758, 0
      %v939 = vsel %vm778, %v759, 0
      %v942 = vsel %vm778, %v760, 0
      %v945 = vsel %vm778, %v761, 0
      %v948 = vsel %vm778, %v762, 0
      %v951 = vsel %vm778, %v763, 0
      %v954 = vsel %vm778, %v764, 0
      %v957 = vsel %vm778, %v765, 0
      %v960 = vsel %vm778, %v766, 0
      %v963 = vsel %vm778, %v767, 0
      %v966 = vsel %vm778, %v768, 0
      %v969 = vsel %vm778, %v769, 0
      %971 = vmatpush.msra.mxu0 0.0
      %972 = vmatpush.msra.mxu0 0.0
      %973 = vmatpush.msra.mxu0 0.0
      %974 = vmatpush.msra.mxu0 0.0
      %975 = vmatpush.msra.mxu0 0.0
      %976 = vmatpush.msra.mxu0 0.0
      %977 = vmatpush.msra.mxu0 0.0
      %978 = vmatpush.msra.mxu0 0.0
      %979 = vmatpush.msra.mxu0 0.0
      %980 = vmatpush.msra.mxu0 0.0
      %981 = vmatpush.msra.mxu0 0.0
      %982 = vmatpush.msra.mxu0 0.0
      %983 = vmatpush.msra.mxu0 %v773
      %984 = vmatpush.msra.mxu0 %v772
      %985 = vmatpush.msra.mxu0 %v771
      %986 = vmatpush.msra.mxu0 %v770
      %987 = vmatmul.f32.gmra.mxu0 %v780
      %v988 = vpop.f32.mrf.mxu0
      %v989 = vadd.f32 %v776, %v988
      %990 = vmatmul.f32.gmra.mxu0 %v783
      %v991 = vpop.f32.mrf.mxu0
      %v992 = vadd.f32 %v776, %v991
      %993 = vmatmul.f32.gmra.mxu0 %v786
      %v994 = vpop.f32.mrf.mxu0
      %v995 = vadd.f32 %v776, %v994
      %996 = vmatmul.f32.gmra.mxu0 %v789
      %v997 = vpop.f32.mrf.mxu0
      %v998 = vadd.f32 %v776, %v997
      %999 = vmatmul.f32.gmra.mxu0 %v792
      %v1000 = vpop.f32.mrf.mxu0
      %v1001 = vadd.f32 %v776, %v1000
      %1002 = vmatmul.f32.gmra.mxu0 %v795
      %v1003 = vpop.f32.mrf.mxu0
      %v1004 = vadd.f32 %v776, %v1003
      %1005 = vmatmul.f32.gmra.mxu0 %v798
      %v1006 = vpop.f32.mrf.mxu0
      %v1007 = vadd.f32 %v776, %v1006
      %1008 = vmatmul.f32.gmra.mxu0 %v801
      %v1009 = vpop.f32.mrf.mxu0
      %v1010 = vadd.f32 %v776, %v1009
      %1011 = vmatmul.f32.gmra.mxu0 %v804
      %v1012 = vpop.f32.mrf.mxu0
      %v1013 = vadd.f32 %v776, %v1012
      %1014 = vmatmul.f32.gmra.mxu0 %v807
      %v1015 = vpop.f32.mrf.mxu0
      %v1016 = vadd.f32 %v776, %v1015
      %1017 = vmatmul.f32.gmra.mxu0 %v810
      %v1018 = vpop.f32.mrf.mxu0
      %v1019 = vadd.f32 %v776, %v1018
      %1020 = vmatmul.f32.gmra.mxu0 %v813
      %v1021 = vpop.f32.mrf.mxu0
      %v1022 = vadd.f32 %v776, %v1021
      %1023 = vmatmul.f32.gmra.mxu0 %v816
      %v1024 = vpop.f32.mrf.mxu0
      %v1025 = vadd.f32 %v776, %v1024
      %1026 = vmatmul.f32.gmra.mxu0 %v819
      %v1027 = vpop.f32.mrf.mxu0
      %v1028 = vadd.f32 %v776, %v1027
      %1029 = vmatmul.f32.gmra.mxu0 %v822
      %v1030 = vpop.f32.mrf.mxu0
      %v1031 = vadd.f32 %v776, %v1030
      %1032 = vmatmul.f32.gmra.mxu0 %v825
      %v1033 = vpop.f32.mrf.mxu0
      %v1034 = vadd.f32 %v776, %v1033
      %1035 = vmatmul.f32.gmra.mxu0 %v828
      %v1036 = vpop.f32.mrf.mxu0
      %v1037 = vadd.f32 %v776, %v1036
      %1038 = vmatmul.f32.gmra.mxu0 %v831
      %v1039 = vpop.f32.mrf.mxu0
      %v1040 = vadd.f32 %v776, %v1039
      %1041 = vmatmul.f32.gmra.mxu0 %v834
      %v1042 = vpop.f32.mrf.mxu0
      %v1043 = vadd.f32 %v776, %v1042
      %1044 = vmatmul.f32.gmra.mxu0 %v837
      %v1045 = vpop.f32.mrf.mxu0
      %v1046 = vadd.f32 %v776, %v1045
      %1047 = vmatmul.f32.gmra.mxu0 %v840
      %v1048 = vpop.f32.mrf.mxu0
      %v1049 = vadd.f32 %v776, %v1048
      %1050 = vmatmul.f32.gmra.mxu0 %v843
      %v1051 = vpop.f32.mrf.mxu0
      %v1052 = vadd.f32 %v776, %v1051
      %1053 = vmatmul.f32.gmra.mxu0 %v846
      %v1054 = vpop.f32.mrf.mxu0
      %v1055 = vadd.f32 %v776, %v1054
      %1056 = vmatmul.f32.gmra.mxu0 %v849
      %v1057 = vpop.f32.mrf.mxu0
      %v1058 = vadd.f32 %v776, %v1057
      %1059 = vmatmul.f32.gmra.mxu0 %v852
      %v1060 = vpop.f32.mrf.mxu0
      %v1061 = vadd.f32 %v776, %v1060
      %1062 = vmatmul.f32.gmra.mxu0 %v855
      %v1063 = vpop.f32.mrf.mxu0
      %v1064 = vadd.f32 %v776, %v1063
      %1065 = vmatmul.f32.gmra.mxu0 %v858
      %v1066 = vpop.f32.mrf.mxu0
      %v1067 = vadd.f32 %v776, %v1066
      %1068 = vmatmul.f32.gmra.mxu0 %v861
      %v1069 = vpop.f32.mrf.mxu0
      %v1070 = vadd.f32 %v776, %v1069
      %1071 = vmatmul.f32.gmra.mxu0 %v864
      %v1072 = vpop.f32.mrf.mxu0
      %v1073 = vadd.f32 %v776, %v1072
      %1074 = vmatmul.f32.gmra.mxu0 %v867
      %v1075 = vpop.f32.mrf.mxu0
      %v1076 = vadd.f32 %v776, %v1075
      %1077 = vmatmul.f32.gmra.mxu0 %v870
      %v1078 = vpop.f32.mrf.mxu0
      %v1079 = vadd.f32 %v776, %v1078
      %1080 = vmatmul.f32.gmra.mxu0 %v873
      %v1081 = vpop.f32.mrf.mxu0
      %v1082 = vadd.f32 %v776, %v1081
      %1083 = vmatmul.f32.gmra.mxu0 %v876
      %v1084 = vpop.f32.mrf.mxu0
      %v1085 = vadd.f32 %v776, %v1084
      %1086 = vmatmul.f32.gmra.mxu0 %v879
      %v1087 = vpop.f32.mrf.mxu0
      %v1088 = vadd.f32 %v776, %v1087
      %1089 = vmatmul.f32.gmra.mxu0 %v882
      %v1090 = vpop.f32.mrf.mxu0
      %v1091 = vadd.f32 %v776, %v1090
      %1092 = vmatmul.f32.gmra.mxu0 %v885
      %v1093 = vpop.f32.mrf.mxu0
      %v1094 = vadd.f32 %v776, %v1093
      %1095 = vmatmul.f32.gmra.mxu0 %v888
      %v1096 = vpop.f32.mrf.mxu0
      %v1097 = vadd.f32 %v776, %v1096
      %1098 = vmatmul.f32.gmra.mxu0 %v891
      %v1099 = vpop.f32.mrf.mxu0
      %v1100 = vadd.f32 %v776, %v1099
      %1101 = vmatmul.f32.gmra.mxu0 %v894
      %v1102 = vpop.f32.mrf.mxu0
      %v1103 = vadd.f32 %v776, %v1102
      %1104 = vmatmul.f32.gmra.mxu0 %v897
      %v1105 = vpop.f32.mrf.mxu0
      %v1106 = vadd.f32 %v776, %v1105
      %1107 = vmatmul.f32.gmra.mxu0 %v900
      %v1108 = vpop.f32.mrf.mxu0
      %v1109 = vadd.f32 %v776, %v1108
      %1110 = vmatmul.f32.gmra.mxu0 %v903
      %v1111 = vpop.f32.mrf.mxu0
      %v1112 = vadd.f32 %v776, %v1111
      %1113 = vmatmul.f32.gmra.mxu0 %v906
      %v1114 = vpop.f32.mrf.mxu0
      %v1115 = vadd.f32 %v776, %v1114
      %1116 = vmatmul.f32.gmra.mxu0 %v909
      %v1117 = vpop.f32.mrf.mxu0
      %v1118 = vadd.f32 %v776, %v1117
      %1119 = vmatmul.f32.gmra.mxu0 %v912
      %v1120 = vpop.f32.mrf.mxu0
      %v1121 = vadd.f32 %v776, %v1120
      %1122 = vmatmul.f32.gmra.mxu0 %v915
      %v1123 = vpop.f32.mrf.mxu0
      %v1124 = vadd.f32 %v776, %v1123
      %1125 = vmatmul.f32.gmra.mxu0 %v918
      %v1126 = vpop.f32.mrf.mxu0
      %v1127 = vadd.f32 %v776, %v1126
      %1128 = vmatmul.f32.gmra.mxu0 %v921
      %v1129 = vpop.f32.mrf.mxu0
      %v1130 = vadd.f32 %v776, %v1129
      %1131 = vmatmul.f32.gmra.mxu0 %v924
      %v1132 = vpop.f32.mrf.mxu0
      %v1133 = vadd.f32 %v776, %v1132
      %1134 = vmatmul.f32.gmra.mxu0 %v927
      %v1135 = vpop.f32.mrf.mxu0
      %v1136 = vadd.f32 %v776, %v1135
      %1137 = vmatmul.f32.gmra.mxu0 %v930
      %v1138 = vpop.f32.mrf.mxu0
      %v1139 = vadd.f32 %v776, %v1138
      %1140 = vmatmul.f32.gmra.mxu0 %v933
      %v1141 = vpop.f32.mrf.mxu0
      %v1142 = vadd.f32 %v776, %v1141
      %1143 = vmatmul.f32.gmra.mxu0 %v936
      %v1144 = vpop.f32.mrf.mxu0
      %v1145 = vadd.f32 %v776, %v1144
      %1146 = vmatmul.f32.gmra.mxu0 %v939
      %v1147 = vpop.f32.mrf.mxu0
      %v1148 = vadd.f32 %v776, %v1147
      %1149 = vmatmul.f32.gmra.mxu0 %v942
      %v1150 = vpop.f32.mrf.mxu0
      %v1151 = vadd.f32 %v776, %v1150
      %1152 = vmatmul.f32.gmra.mxu0 %v945
      %v1153 = vpop.f32.mrf.mxu0
      %v1154 = vadd.f32 %v776, %v1153
      %1155 = vmatmul.f32.gmra.mxu0 %v948
      %v1156 = vpop.f32.mrf.mxu0
      %v1157 = vadd.f32 %v776, %v1156
      %1158 = vmatmul.f32.gmra.mxu0 %v951
      %v1159 = vpop.f32.mrf.mxu0
      %v1160 = vadd.f32 %v776, %v1159
      %1161 = vmatmul.f32.gmra.mxu0 %v954
      %v1162 = vpop.f32.mrf.mxu0
      %v1163 = vadd.f32 %v776, %v1162
      %1164 = vmatmul.f32.gmra.mxu0 %v957
      %v1165 = vpop.f32.mrf.mxu0
      %v1166 = vadd.f32 %v776, %v1165
      %1167 = vmatmul.f32.gmra.mxu0 %v960
      %v1168 = vpop.f32.mrf.mxu0
      %v1169 = vadd.f32 %v776, %v1168
      %1170 = vmatmul.f32.gmra.mxu0 %v963
      %v1171 = vpop.f32.mrf.mxu0
      %v1172 = vadd.f32 %v776, %v1171
      %1173 = vmatmul.f32.gmra.mxu0 %v966
      %v1174 = vpop.f32.mrf.mxu0
      %v1175 = vadd.f32 %v776, %v1174
      %1176 = vmatmul.f32.gmra.mxu0 %v969
      %v1177 = vpop.f32.mrf.mxu0
      %v1178 = vadd.f32 %v776, %v1177
      %1179 = vdwg.mxu0
      %vm1180 = vcmask 130048
      %1181 = vst.msk [vmem:[%s226] sm:$0xff] %vm1180, %v989
      %1182 = vst.msk [vmem:[%s226 + $0x8] sm:$0xff] %vm1180, %v992
      %1183 = vst.msk [vmem:[%s226 + $0x10] sm:$0xff] %vm1180, %v995
      %1184 = vst.msk [vmem:[%s226 + $0x18] sm:$0xff] %vm1180, %v998
      %1185 = vst.msk [vmem:[%s226 + $0x20] sm:$0xff] %vm1180, %v1001
      %1186 = vst.msk [vmem:[%s226 + $0x28] sm:$0xff] %vm1180, %v1004
      %1187 = vst.msk [vmem:[%s226 + $0x30] sm:$0xff] %vm1180, %v1007
      %1188 = vst.msk [vmem:[%s226 + $0x38] sm:$0xff] %vm1180, %v1010
      %1189 = vst.msk [vmem:[%s226 + $0x40] sm:$0xff] %vm1180, %v1013
      %1190 = vst.msk [vmem:[%s226 + $0x48] sm:$0xff] %vm1180, %v1016
      %1191 = vst.msk [vmem:[%s226 + $0x50] sm:$0xff] %vm1180, %v1019
      %1192 = vst.msk [vmem:[%s226 + $0x58] sm:$0xff] %vm1180, %v1022
      %1193 = vst.msk [vmem:[%s226 + $0x60] sm:$0xff] %vm1180, %v1025
      %1194 = vst.msk [vmem:[%s226 + $0x68] sm:$0xff] %vm1180, %v1028
      %1195 = vst.msk [vmem:[%s226 + $0x70] sm:$0xff] %vm1180, %v1031
      %1196 = vst.msk [vmem:[%s226 + $0x78] sm:$0xff] %vm1180, %v1034
      %1197 = vst.msk [vmem:[%s226 + $0x80] sm:$0xff] %vm1180, %v1037
      %1198 = vst.msk [vmem:[%s226 + $0x88] sm:$0xff] %vm1180, %v1040
      %1199 = vst.msk [vmem:[%s226 + $0x90] sm:$0xff] %vm1180, %v1043
      %1200 = vst.msk [vmem:[%s226 + $0x98] sm:$0xff] %vm1180, %v1046
      %1201 = vst.msk [vmem:[%s226 + $0xa0] sm:$0xff] %vm1180, %v1049
      %1202 = vst.msk [vmem:[%s226 + $0xa8] sm:$0xff] %vm1180, %v1052
      %1203 = vst.msk [vmem:[%s226 + $0xb0] sm:$0xff] %vm1180, %v1055
      %1204 = vst.msk [vmem:[%s226 + $0xb8] sm:$0xff] %vm1180, %v1058
      %1205 = vst.msk [vmem:[%s226 + $0xc0] sm:$0xff] %vm1180, %v1061
      %1206 = vst.msk [vmem:[%s226 + $0xc8] sm:$0xff] %vm1180, %v1064
      %1207 = vst.msk [vmem:[%s226 + $0xd0] sm:$0xff] %vm1180, %v1067
      %1208 = vst.msk [vmem:[%s226 + $0xd8] sm:$0xff] %vm1180, %v1070
      %1209 = vst.msk [vmem:[%s226 + $0xe0] sm:$0xff] %vm1180, %v1073
      %1210 = vst.msk [vmem:[%s226 + $0xe8] sm:$0xff] %vm1180, %v1076
      %1211 = vst.msk [vmem:[%s226 + $0xf0] sm:$0xff] %vm1180, %v1079
      %1212 = vst.msk [vmem:[%s226 + $0xf8] sm:$0xff] %vm1180, %v1082
      %1213 = vst.msk [vmem:[%s226 + $0x100] sm:$0xff] %vm1180, %v1085
      %1214 = vst.msk [vmem:[%s226 + $0x108] sm:$0xff] %vm1180, %v1088
      %1215 = vst.msk [vmem:[%s226 + $0x110] sm:$0xff] %vm1180, %v1091
      %1216 = vst.msk [vmem:[%s226 + $0x118] sm:$0xff] %vm1180, %v1094
      %1217 = vst.msk [vmem:[%s226 + $0x120] sm:$0xff] %vm1180, %v1097
      %1218 = vst.msk [vmem:[%s226 + $0x128] sm:$0xff] %vm1180, %v1100
      %1219 = vst.msk [vmem:[%s226 + $0x130] sm:$0xff] %vm1180, %v1103
      %1220 = vst.msk [vmem:[%s226 + $0x138] sm:$0xff] %vm1180, %v1106
      %1221 = vst.msk [vmem:[%s226 + $0x140] sm:$0xff] %vm1180, %v1109
      %1222 = vst.msk [vmem:[%s226 + $0x148] sm:$0xff] %vm1180, %v1112
      %1223 = vst.msk [vmem:[%s226 + $0x150] sm:$0xff] %vm1180, %v1115
      %1224 = vst.msk [vmem:[%s226 + $0x158] sm:$0xff] %vm1180, %v1118
      %1225 = vst.msk [vmem:[%s226 + $0x160] sm:$0xff] %vm1180, %v1121
      %1226 = vst.msk [vmem:[%s226 + $0x168] sm:$0xff] %vm1180, %v1124
      %1227 = vst.msk [vmem:[%s226 + $0x170] sm:$0xff] %vm1180, %v1127
      %1228 = vst.msk [vmem:[%s226 + $0x178] sm:$0xff] %vm1180, %v1130
      %1229 = vst.msk [vmem:[%s226 + $0x180] sm:$0xff] %vm1180, %v1133
      %1230 = vst.msk [vmem:[%s226 + $0x188] sm:$0xff] %vm1180, %v1136
      %1231 = vst.msk [vmem:[%s226 + $0x190] sm:$0xff] %vm1180, %v1139
      %1232 = vst.msk [vmem:[%s226 + $0x198] sm:$0xff] %vm1180, %v1142
      %1233 = vst.msk [vmem:[%s226 + $0x1a0] sm:$0xff] %vm1180, %v1145
      %1234 = vst.msk [vmem:[%s226 + $0x1a8] sm:$0xff] %vm1180, %v1148
      %1235 = vst.msk [vmem:[%s226 + $0x1b0] sm:$0xff] %vm1180, %v1151
      %1236 = vst.msk [vmem:[%s226 + $0x1b8] sm:$0xff] %vm1180, %v1154
      %1237 = vst.msk [vmem:[%s226 + $0x1c0] sm:$0xff] %vm1180, %v1157
      %1238 = vst.msk [vmem:[%s226 + $0x1c8] sm:$0xff] %vm1180, %v1160
      %1239 = vst.msk [vmem:[%s226 + $0x1d0] sm:$0xff] %vm1180, %v1163
      %1240 = vst.msk [vmem:[%s226 + $0x1d8] sm:$0xff] %vm1180, %v1166
      %1241 = vst.msk [vmem:[%s226 + $0x1e0] sm:$0xff] %vm1180, %v1169
      %1242 = vst.msk [vmem:[%s226 + $0x1e8] sm:$0xff] %vm1180, %v1172
      %1243 = vst.msk [vmem:[%s226 + $0x1f0] sm:$0xff] %vm1180, %v1175
      %1244 = vst.msk [vmem:[%s226 + $0x1f8] sm:$0xff] %vm1180, %v1178
      %s1245 = smul.u32 64, %s16
      %p1246 = scmp.lt.s32.totalorder %s1245, 127
      %s1247 = scalar_select %p1246, %s1245, 127
      %s1248 = smul.addr %s1247, 8
      %s1249 = scalar_lea.vmem %s5, %s1248
      // Predicated region
      $region41: #{tpu_custom_call.1} parent=39 // pred_check
        %p1250 = pneg %p144
      $region42: #{tpu_custom_call.1} parent=39 // pred_check_branch
        %1252 = sbr.rel (%p1250) target = $region44
      $region43: #{tpu_custom_call.1} parent=39 // pred_region
        %s1253 = smul.u32 64, %s16
      $region44: #{tpu_custom_call.1} parent=39 // pred_fallthru
        _
    $region40: #{tpu_custom_call.1} parent=5 // pred_fallthru
      _
    %p1254 = scmp.le.s32.totalorder 2, %s11
    // Predicated region
    $region45: #{tpu_custom_call.1} parent=5 // pred_check
      %p1255 = pneg %p1254
    $region46: #{tpu_custom_call.1} parent=5 // pred_check_branch
      %1257 = sbr.rel (%p1255) target = $region48
    $region47: #{tpu_custom_call.1} parent=5 // pred_region
      %s1258 = ssub.s32 %s11, 2
      // Predicated region
      $region49: #{tpu_custom_call.1} parent=47 // pred_check
        %p1259 = pneg %p150
      $region50: #{tpu_custom_call.1} parent=47 // pred_check_branch
        %1261 = sbr.rel (%p1259) target = $region52
      $region51: #{tpu_custom_call.1} parent=47 // pred_region
        %s1262 = smul.u32 64, %s17
        %p1263 = scmp.lt.s32.totalorder %s1262, 127
        %s1264 = scalar_select %p1263, %s1262, 127
        %s1265 = smul.addr %s1264, 8
        %s1266 = scalar_lea.vmem %s5, %s1265
      $region52: #{tpu_custom_call.1} parent=47 // pred_fallthru
        _
    $region48: #{tpu_custom_call.1} parent=5 // pred_fallthru
      _
  $region6: #{tpu_custom_call.1} parent=0 // loop_footer
    %s15 = sadd.s32 1, %s11
  $region7: #{tpu_custom_call.1} parent=0 // loop_footer_branch
    %10 = sbr.rel target = $region3
  $region8: #{tpu_custom_call.1} parent=0 // loop_exit
    _

</llo_original>
